<compile_context>
chip_gen: v5e
topology: v5e:2x2
jax: 0.10.0
libtpu: 0.0.40
codegen_flags: <defaults>
</compile_context>

<pallas_src>
import jax
import jax.numpy as jnp
from jax.experimental import pallas as pl
from jax.experimental.pallas import tpu as pltpu

LEAK = 0.2                    # LeakyReLU negative slope
MATMUL_DTYPE = jnp.bfloat16   # MXU operand dtype (accumulation stays f32)
CONV_TILE_N = 512             # pooled-pixel rows per grid step (multiple of 8)
MLP_TILE_B = 256              # batch rows per grid step (multiple of 8)


def _leaky(x):
    return jnp.where(x > 0, x, LEAK * x)


def _round_up(x, m):
    return (x + m - 1) // m * m


# ---------------------------------------------------------------------------
# Kernel 1: conv (im2col matmul) + bias + LeakyReLU + 2x2 average pool.
#   p_ref: (4, TN, K) bf16 -- 4 = positions inside the 2x2 pooling window
#   w_ref: (K, Cout)  bf16   (resident across the grid)
#   b_ref: (1, Cout)  f32    (resident across the grid)
#   o_ref: (TN, Cout) f32
# ---------------------------------------------------------------------------
def conv_pool_kernel(p_ref, w_ref, b_ref, o_ref):
    tn = p_ref.shape[1]
    k = p_ref.shape[2]
    # Fuse the 4 pool-position matmuls into one tall matmul. TN is a multiple
    # of 8, so this reshape is a tile-aligned view (no relayout).
    p2d = p_ref[...].reshape(4 * tn, k)
    y = jnp.dot(p2d, w_ref[...], preferred_element_type=jnp.float32)
    bias = b_ref[...]                      # hoisted: single broadcast
    y = _leaky(y + bias)
    # 2x2 average pool: sum the 4 pool-position row-groups (aligned slices).
    acc = y[0:tn] + y[tn:2 * tn] + y[2 * tn:3 * tn] + y[3 * tn:4 * tn]
    o_ref[...] = (0.25 * acc).astype(o_ref.dtype)


# ---------------------------------------------------------------------------
# Kernel 2: fused MLP  fc1->LReLU->fc2->LReLU->fc3->LReLU->fc4->Sigmoid
#   x_ref: (TB, 400) bf16; weights (in, out) bf16; biases (1, out) f32
# ---------------------------------------------------------------------------
def mlp_kernel(x_ref, w1, b1, w2, b2, w3, b3, w4, b4, o_ref):
    h = _leaky(jnp.dot(x_ref[...], w1[...],
                       preferred_element_type=jnp.float32) + b1[...])
    h = _leaky(jnp.dot(h.astype(MATMUL_DTYPE), w2[...],
                       preferred_element_type=jnp.float32) + b2[...])
    h = _leaky(jnp.dot(h.astype(MATMUL_DTYPE), w3[...],
                       preferred_element_type=jnp.float32) + b3[...])
    z = jnp.dot(h.astype(MATMUL_DTYPE), w4[...],
                preferred_element_type=jnp.float32) + b4[...]
    o_ref[...] = jax.nn.sigmoid(z).astype(o_ref.dtype)


# ---------------------------------------------------------------------------
# Wrappers
# ---------------------------------------------------------------------------
def conv_pool_layer(x_nhwc, w, b, tile_n=CONV_TILE_N):
    """Conv2d(valid, stride 1) + LeakyReLU(0.2) + AvgPool2d(2), NHWC in/out."""
    B, H, W, Cin = x_nhwc.shape
    Cout, _, KH, KW = w.shape
    Ho, Wo = H - KH + 1, W - KW + 1
    Hp, Wp = Ho // 2, Wo // 2            # AvgPool2d(2) floors, like PyTorch
    K = KH * KW * Cin
    N = B * Hp * Wp

    # im2col with patch columns ordered (kh, kw, cin) -> matches the weight
    # flatten below.
    cols = [x_nhwc[:, kh:kh + Ho, kw:kw + Wo, :]
            for kh in range(KH) for kw in range(KW)]
    pf = jnp.concatenate(cols, axis=-1)                      # (B, Ho, Wo, K)

    # Group patches by position inside each 2x2 pool window.
    pool_pos = [pf[:, di:2 * Hp:2, dj:2 * Wp:2, :].reshape(N, K)
                for di in range(2) for dj in range(2)]
    patches = jnp.stack(pool_pos, axis=0)                    # (4, N, K)

    tn = min(tile_n, _round_up(N, 8))
    n_pad = _round_up(N, tn)
    if n_pad != N:
        patches = jnp.pad(patches, ((0, 0), (0, n_pad - N), (0, 0)))
    patches = patches.astype(MATMUL_DTYPE)

    # torch weight (Cout, Cin, KH, KW) -> (KH*KW*Cin, Cout), (kh,kw,cin) order.
    w_flat = w.transpose(2, 3, 1, 0).reshape(K, Cout).astype(MATMUL_DTYPE)
    b2 = b.reshape(1, Cout).astype(jnp.float32)

    cost = pl.CostEstimate(
        flops=int(2 * 4 * n_pad * K * Cout),
        transcendentals=0,
        bytes_accessed=int(4 * n_pad * K * 2 + K * Cout * 2
                           + Cout * 4 + n_pad * Cout * 4))

    out = pl.pallas_call(
        conv_pool_kernel,
        out_shape=jax.ShapeDtypeStruct((n_pad, Cout), jnp.float32),
        grid=(n_pad // tn,),
        in_specs=[
            pl.BlockSpec((4, tn, K), lambda i: (0, i, 0)),   # tiled over N
            pl.BlockSpec((K, Cout), lambda i: (0, 0)),       # resident weight
            pl.BlockSpec((1, Cout), lambda i: (0, 0)),       # resident bias
        ],
        out_specs=pl.BlockSpec((tn, Cout), lambda i: (i, 0)),
        compiler_params=pltpu.CompilerParams(
            dimension_semantics=("parallel",)),              # 2-TC shard on v7x
        cost_estimate=cost,
    )(patches, w_flat, b2)

    return out[:N].reshape(B, Hp, Wp, Cout)                  # NHWC


def mlp_head(x_flat, fc_params, tile_b=MLP_TILE_B):
    B, F = x_flat.shape
    tb = min(tile_b, _round_up(B, 8))
    b_pad = _round_up(B, tb)
    if b_pad != B:
        x_flat = jnp.pad(x_flat, ((0, b_pad - B), (0, 0)))
    x_bf = x_flat.astype(MATMUL_DTYPE)

    ws = [fc_params[i].astype(MATMUL_DTYPE) for i in (0, 2, 4, 6)]
    bs = [fc_params[i].astype(jnp.float32) for i in (1, 3, 5, 7)]

    in_specs = [pl.BlockSpec((tb, F), lambda i: (i, 0))]     # tiled over batch
    args = [x_bf]
    for w_m, b_m in zip(ws, bs):
        in_specs.append(pl.BlockSpec(w_m.shape, lambda i: (0, 0)))  # resident
        in_specs.append(pl.BlockSpec(b_m.shape, lambda i: (0, 0)))  # resident
        args.extend([w_m, b_m])

    flops = 2 * b_pad * sum(int(w_m.shape[0]) * int(w_m.shape[1]) for w_m in ws)
    bytes_accessed = (int(x_bf.size) * 2
                      + sum(int(w_m.size) * 2 for w_m in ws)
                      + sum(int(b_m.size) * 4 for b_m in bs)
                      + b_pad * 4)
    cost = pl.CostEstimate(flops=int(flops), transcendentals=int(b_pad),
                           bytes_accessed=int(bytes_accessed))

    out = pl.pallas_call(
        mlp_kernel,
        out_shape=jax.ShapeDtypeStruct((b_pad, 1), jnp.float32),
        grid=(b_pad // tb,),
        in_specs=in_specs,
        out_specs=pl.BlockSpec((tb, 1), lambda i: (i, 0)),
        compiler_params=pltpu.CompilerParams(
            dimension_semantics=("parallel",)),
        cost_estimate=cost,
    )(*args)
    return out[:B]


def lenet_forward(x, params):
    """x: (B, 1, 32, 32) NCHW float32 -> (B, 1) sigmoid probabilities."""
    xh = jnp.transpose(x, (0, 2, 3, 1))                              # NHWC once
    h = conv_pool_layer(xh, params["conv1_w"], params["conv1_b"])    # (B,13,13,6)
    h = conv_pool_layer(h, params["conv2_w"], params["conv2_b"])     # (B,5,5,16)
    B = x.shape[0]
    Hp, Wp, C = h.shape[1:]
    h_flat = h.reshape(B, Hp * Wp * C)                               # NHWC flatten
    # Permute fc1 rows so the NHWC flatten matches torch's (C,H,W) flatten —
    # a tiny fixed-size gather, independent of batch size.
    perm = jnp.arange(C * Hp * Wp).reshape(C, Hp, Wp).transpose(1, 2, 0).reshape(-1)
    fc = [params["fc1_w"][perm], params["fc1_b"],
          params["fc2_w"], params["fc2_b"],
          params["fc3_w"], params["fc3_b"],
          params["fc4_w"], params["fc4_b"]]
    return mlp_head(h_flat, fc)


def init_params(key):
    ks = jax.random.split(key, 12)

    def nrm(k, shape, scale=0.1):
        return scale * jax.random.normal(k, shape, dtype=jnp.float32)

    return {
        # conv weights in PyTorch layout (Cout, Cin, KH, KW)
        "conv1_w": nrm(ks[0], (6, 1, 7, 7)),   "conv1_b": nrm(ks[1], (6,)),
        "conv2_w": nrm(ks[2], (16, 6, 3, 3)),  "conv2_b": nrm(ks[3], (16,)),
        # fc weights stored as (in, out); biases as (1, out)
        "fc1_w": nrm(ks[4], (16 * 5 * 5, 120)), "fc1_b": nrm(ks[5], (1, 120)),
        "fc2_w": nrm(ks[6], (120, 84)),         "fc2_b": nrm(ks[7], (1, 84)),
        "fc3_w": nrm(ks[8], (84, 20)),          "fc3_b": nrm(ks[9], (1, 20)),
        "fc4_w": nrm(ks[10], (20, 1)),          "fc4_b": nrm(ks[11], (1, 1)),
    }


if __name__ == "__main__":
    key = jax.random.PRNGKey(0)
    k_in, k_par = jax.random.split(key)
    # Batch 2, 1 channel, 32x32 (required so flatten == 16*5*5 == 400).
    x = jax.random.normal(k_in, (2, 1, 32, 32), dtype=jnp.float32)
    params = init_params(k_par)

    out = jax.jit(lenet_forward)(x, params)
    out = jax.block_until_ready(out)
    assert out.shape == (2, 1)
    assert bool(jnp.all(jnp.isfinite(out)))
    print("KERNEL_OK")
</pallas_src>

<mosaic_0001>
module attributes {stable_mosaic.version = 11 : i64} {
  func.func @conv_pool_kernel(%arg0: i32, %arg1: memref<4x344x49xbf16, #tpu.memory_space<vmem>>, %arg2: memref<49x6xbf16, #tpu.memory_space<vmem>>, %arg3: memref<1x6xf32, #tpu.memory_space<vmem>>, %arg4: memref<344x6xf32, #tpu.memory_space<vmem>>) attributes {dimension_semantics = [#tpu.dimension_semantics<parallel>], iteration_bounds = array<i64: 1>, scalar_prefetch = 0 : i64, scratch_operands = 0 : i64, tpu.core_type = #tpu.core_type<tc>, window_params = [{transform_indices = @transform_0, window_bounds = array<i64: 4, 344, 49>}, {pipeline_mode = #tpu.pipeline_mode<synchronous>, transform_indices = @transform_1, window_bounds = array<i64: 49, 6>}, {pipeline_mode = #tpu.pipeline_mode<synchronous>, transform_indices = @transform_2, window_bounds = array<i64: 1, 6>}, {transform_indices = @transform_3, window_bounds = array<i64: 344, 6>}]} {
    %c0 = arith.constant 0 : index
    %c0_0 = arith.constant 0 : index
    %c0_1 = arith.constant 0 : index
    %0 = vector.load %arg1[%c0, %c0_0, %c0_1] : memref<4x344x49xbf16, #tpu.memory_space<vmem>>, vector<4x344x49xbf16>
    %1 = vector.shape_cast %0 : vector<4x344x49xbf16> to vector<1376x49xbf16>
    %c0_2 = arith.constant 0 : index
    %c0_3 = arith.constant 0 : index
    %2 = vector.load %arg2[%c0_2, %c0_3] : memref<49x6xbf16, #tpu.memory_space<vmem>>, vector<49x6xbf16>
    %cst = arith.constant dense<0.000000e+00> : vector<1376x6xf32>
    %3 = tpu.matmul %1, %2, %cst {dimension_numbers = #tpu.dot_dimension_numbers<[1], [0], [0], [1], [0, 0, 1, 1], [], []>} : vector<1376x49xbf16>, vector<49x6xbf16>, vector<1376x6xf32> -> vector<1376x6xf32>
    %c0_4 = arith.constant 0 : index
    %c0_5 = arith.constant 0 : index
    %4 = vector.load %arg3[%c0_4, %c0_5] : memref<1x6xf32, #tpu.memory_space<vmem>>, vector<1x6xf32>
    %5 = vector.broadcast %4 : vector<1x6xf32> to vector<1376x6xf32>
    %6 = arith.addf %3, %5 : vector<1376x6xf32>
    %cst_6 = arith.constant 0.000000e+00 : f32
    %7 = vector.broadcast %cst_6 : f32 to vector<1376x6xf32>
    %8 = arith.cmpf ogt, %6, %7 : vector<1376x6xf32>
    %cst_7 = arith.constant 2.000000e-01 : f32
    %9 = vector.broadcast %cst_7 : f32 to vector<1376x6xf32>
    %10 = arith.mulf %9, %6 : vector<1376x6xf32>
    %11 = arith.select %8, %6, %10 : vector<1376x6xi1>, vector<1376x6xf32>
    %12 = vector.extract_strided_slice %11 {offsets = [0, 0], sizes = [344, 6], strides = [1, 1]} : vector<1376x6xf32> to vector<344x6xf32>
    %13 = vector.extract_strided_slice %11 {offsets = [344, 0], sizes = [344, 6], strides = [1, 1]} : vector<1376x6xf32> to vector<344x6xf32>
    %14 = arith.addf %12, %13 : vector<344x6xf32>
    %15 = vector.extract_strided_slice %11 {offsets = [688, 0], sizes = [344, 6], strides = [1, 1]} : vector<1376x6xf32> to vector<344x6xf32>
    %16 = arith.addf %14, %15 : vector<344x6xf32>
    %17 = vector.extract_strided_slice %11 {offsets = [1032, 0], sizes = [344, 6], strides = [1, 1]} : vector<1376x6xf32> to vector<344x6xf32>
    %18 = arith.addf %16, %17 : vector<344x6xf32>
    %cst_8 = arith.constant 2.500000e-01 : f32
    %19 = vector.broadcast %cst_8 : f32 to vector<344x6xf32>
    %20 = arith.mulf %19, %18 : vector<344x6xf32>
    %c0_9 = arith.constant 0 : index
    %c0_10 = arith.constant 0 : index
    %21 = vector.load %arg4[%c0_9, %c0_10] : memref<344x6xf32, #tpu.memory_space<vmem>>, vector<344x6xf32>
    tpu.vector_store %arg4[%c0_9, %c0_10], %20 {strides = array<i32>} : memref<344x6xf32, #tpu.memory_space<vmem>>, vector<344x6xf32>,
    return
  }
  func.func @transform_0(%arg0: i32) -> (i32, i32, i32) {
    %c0_i32 = arith.constant 0 : i32
    %c0_i32_0 = arith.constant 0 : i32
    %c0_i32_1 = arith.constant 0 : i32
    return %c0_i32, %arg0, %c0_i32_0 : i32, i32, i32
  }
  func.func @transform_1(%arg0: i32) -> (i32, i32) {
    %c0_i32 = arith.constant 0 : i32
    %c0_i32_0 = arith.constant 0 : i32
    %c0_i32_1 = arith.constant 0 : i32
    return %c0_i32, %c0_i32_0 : i32, i32
  }
  func.func @transform_2(%arg0: i32) -> (i32, i32) {
    %c0_i32 = arith.constant 0 : i32
    %c0_i32_0 = arith.constant 0 : i32
    %c0_i32_1 = arith.constant 0 : i32
    return %c0_i32, %c0_i32_0 : i32, i32
  }
  func.func @transform_3(%arg0: i32) -> (i32, i32) {
    %c0_i32 = arith.constant 0 : i32
    %c0_i32_0 = arith.constant 0 : i32
    return %arg0, %c0_i32 : i32, i32
  }
}

module attributes {stable_mosaic.version = 11 : i64} {
  func.func @conv_pool_kernel(%arg0: i32, %arg1: memref<4x56x54xbf16, #tpu.memory_space<vmem>>, %arg2: memref<54x16xbf16, #tpu.memory_space<vmem>>, %arg3: memref<1x16xf32, #tpu.memory_space<vmem>>, %arg4: memref<56x16xf32, #tpu.memory_space<vmem>>) attributes {dimension_semantics = [#tpu.dimension_semantics<parallel>], iteration_bounds = array<i64: 1>, scalar_prefetch = 0 : i64, scratch_operands = 0 : i64, tpu.core_type = #tpu.core_type<tc>, window_params = [{transform_indices = @transform_0, window_bounds = array<i64: 4, 56, 54>}, {pipeline_mode = #tpu.pipeline_mode<synchronous>, transform_indices = @transform_1, window_bounds = array<i64: 54, 16>}, {pipeline_mode = #tpu.pipeline_mode<synchronous>, transform_indices = @transform_2, window_bounds = array<i64: 1, 16>}, {transform_indices = @transform_3, window_bounds = array<i64: 56, 16>}]} {
    %c0 = arith.constant 0 : index
    %c0_0 = arith.constant 0 : index
    %c0_1 = arith.constant 0 : index
    %0 = vector.load %arg1[%c0, %c0_0, %c0_1] : memref<4x56x54xbf16, #tpu.memory_space<vmem>>, vector<4x56x54xbf16>
    %1 = vector.shape_cast %0 : vector<4x56x54xbf16> to vector<224x54xbf16>
    %c0_2 = arith.constant 0 : index
    %c0_3 = arith.constant 0 : index
    %2 = vector.load %arg2[%c0_2, %c0_3] : memref<54x16xbf16, #tpu.memory_space<vmem>>, vector<54x16xbf16>
    %cst = arith.constant dense<0.000000e+00> : vector<224x16xf32>
    %3 = tpu.matmul %1, %2, %cst {dimension_numbers = #tpu.dot_dimension_numbers<[1], [0], [0], [1], [0, 0, 1, 1], [], []>} : vector<224x54xbf16>, vector<54x16xbf16>, vector<224x16xf32> -> vector<224x16xf32>
    %c0_4 = arith.constant 0 : index
    %c0_5 = arith.constant 0 : index
    %4 = vector.load %arg3[%c0_4, %c0_5] : memref<1x16xf32, #tpu.memory_space<vmem>>, vector<1x16xf32>
    %5 = vector.broadcast %4 : vector<1x16xf32> to vector<224x16xf32>
    %6 = arith.addf %3, %5 : vector<224x16xf32>
    %cst_6 = arith.constant 0.000000e+00 : f32
    %7 = vector.broadcast %cst_6 : f32 to vector<224x16xf32>
    %8 = arith.cmpf ogt, %6, %7 : vector<224x16xf32>
    %cst_7 = arith.constant 2.000000e-01 : f32
    %9 = vector.broadcast %cst_7 : f32 to vector<224x16xf32>
    %10 = arith.mulf %9, %6 : vector<224x16xf32>
    %11 = arith.select %8, %6, %10 : vector<224x16xi1>, vector<224x16xf32>
    %12 = vector.extract_strided_slice %11 {offsets = [0, 0], sizes = [56, 16], strides = [1, 1]} : vector<224x16xf32> to vector<56x16xf32>
    %13 = vector.extract_strided_slice %11 {offsets = [56, 0], sizes = [56, 16], strides = [1, 1]} : vector<224x16xf32> to vector<56x16xf32>
    %14 = arith.addf %12, %13 : vector<56x16xf32>
    %15 = vector.extract_strided_slice %11 {offsets = [112, 0], sizes = [56, 16], strides = [1, 1]} : vector<224x16xf32> to vector<56x16xf32>
    %16 = arith.addf %14, %15 : vector<56x16xf32>
    %17 = vector.extract_strided_slice %11 {offsets = [168, 0], sizes = [56, 16], strides = [1, 1]} : vector<224x16xf32> to vector<56x16xf32>
    %18 = arith.addf %16, %17 : vector<56x16xf32>
    %cst_8 = arith.constant 2.500000e-01 : f32
    %19 = vector.broadcast %cst_8 : f32 to vector<56x16xf32>
    %20 = arith.mulf %19, %18 : vector<56x16xf32>
    %c0_9 = arith.constant 0 : index
    %c0_10 = arith.constant 0 : index
    %21 = vector.load %arg4[%c0_9, %c0_10] : memref<56x16xf32, #tpu.memory_space<vmem>>, vector<56x16xf32>
    tpu.vector_store %arg4[%c0_9, %c0_10], %20 {strides = array<i32>} : memref<56x16xf32, #tpu.memory_space<vmem>>, vector<56x16xf32>,
    return
  }
  func.func @transform_0(%arg0: i32) -> (i32, i32, i32) {
    %c0_i32 = arith.constant 0 : i32
    %c0_i32_0 = arith.constant 0 : i32
    %c0_i32_1 = arith.constant 0 : i32
    return %c0_i32, %arg0, %c0_i32_0 : i32, i32, i32
  }
  func.func @transform_1(%arg0: i32) -> (i32, i32) {
    %c0_i32 = arith.constant 0 : i32
    %c0_i32_0 = arith.constant 0 : i32
    %c0_i32_1 = arith.constant 0 : i32
    return %c0_i32, %c0_i32_0 : i32, i32
  }
  func.func @transform_2(%arg0: i32) -> (i32, i32) {
    %c0_i32 = arith.constant 0 : i32
    %c0_i32_0 = arith.constant 0 : i32
    %c0_i32_1 = arith.constant 0 : i32
    return %c0_i32, %c0_i32_0 : i32, i32
  }
  func.func @transform_3(%arg0: i32) -> (i32, i32) {
    %c0_i32 = arith.constant 0 : i32
    %c0_i32_0 = arith.constant 0 : i32
    return %arg0, %c0_i32 : i32, i32
  }
}

module attributes {stable_mosaic.version = 11 : i64} {
  func.func @mlp_kernel(%arg0: i32, %arg1: memref<8x400xbf16, #tpu.memory_space<vmem>>, %arg2: memref<400x120xbf16, #tpu.memory_space<vmem>>, %arg3: memref<1x120xf32, #tpu.memory_space<vmem>>, %arg4: memref<120x84xbf16, #tpu.memory_space<vmem>>, %arg5: memref<1x84xf32, #tpu.memory_space<vmem>>, %arg6: memref<84x20xbf16, #tpu.memory_space<vmem>>, %arg7: memref<1x20xf32, #tpu.memory_space<vmem>>, %arg8: memref<20x1xbf16, #tpu.memory_space<vmem>>, %arg9: memref<1x1xf32, #tpu.memory_space<vmem>>, %arg10: memref<8x1xf32, #tpu.memory_space<vmem>>) attributes {dimension_semantics = [#tpu.dimension_semantics<parallel>], iteration_bounds = array<i64: 1>, scalar_prefetch = 0 : i64, scratch_operands = 0 : i64, tpu.core_type = #tpu.core_type<tc>, window_params = [{transform_indices = @transform_0, window_bounds = array<i64: 8, 400>}, {pipeline_mode = #tpu.pipeline_mode<synchronous>, transform_indices = @transform_1, window_bounds = array<i64: 400, 120>}, {pipeline_mode = #tpu.pipeline_mode<synchronous>, transform_indices = @transform_2, window_bounds = array<i64: 1, 120>}, {pipeline_mode = #tpu.pipeline_mode<synchronous>, transform_indices = @transform_3, window_bounds = array<i64: 120, 84>}, {pipeline_mode = #tpu.pipeline_mode<synchronous>, transform_indices = @transform_4, window_bounds = array<i64: 1, 84>}, {pipeline_mode = #tpu.pipeline_mode<synchronous>, transform_indices = @transform_5, window_bounds = array<i64: 84, 20>}, {pipeline_mode = #tpu.pipeline_mode<synchronous>, transform_indices = @transform_6, window_bounds = array<i64: 1, 20>}, {pipeline_mode = #tpu.pipeline_mode<synchronous>, transform_indices = @transform_7, window_bounds = array<i64: 20, 1>}, {pipeline_mode = #tpu.pipeline_mode<synchronous>, transform_indices = @transform_8, window_bounds = array<i64: 1, 1>}, {transform_indices = @transform_9, window_bounds = array<i64: 8, 1>}]} {
    %c0 = arith.constant 0 : index
    %c0_0 = arith.constant 0 : index
    %0 = vector.load %arg1[%c0, %c0_0] : memref<8x400xbf16, #tpu.memory_space<vmem>>, vector<8x400xbf16>
    %c0_1 = arith.constant 0 : index
    %c0_2 = arith.constant 0 : index
    %1 = vector.load %arg2[%c0_1, %c0_2] : memref<400x120xbf16, #tpu.memory_space<vmem>>, vector<400x120xbf16>
    %cst = arith.constant dense<0.000000e+00> : vector<8x120xf32>
    %2 = tpu.matmul %0, %1, %cst {dimension_numbers = #tpu.dot_dimension_numbers<[1], [0], [0], [1], [0, 0, 1, 1], [], []>} : vector<8x400xbf16>, vector<400x120xbf16>, vector<8x120xf32> -> vector<8x120xf32>
    %c0_3 = arith.constant 0 : index
    %c0_4 = arith.constant 0 : index
    %3 = vector.load %arg3[%c0_3, %c0_4] : memref<1x120xf32, #tpu.memory_space<vmem>>, vector<1x120xf32>
    %4 = vector.broadcast %3 : vector<1x120xf32> to vector<8x120xf32>
    %5 = arith.addf %2, %4 : vector<8x120xf32>
    %cst_5 = arith.constant 0.000000e+00 : f32
    %6 = vector.broadcast %cst_5 : f32 to vector<8x120xf32>
    %7 = arith.cmpf ogt, %5, %6 : vector<8x120xf32>
    %cst_6 = arith.constant 2.000000e-01 : f32
    %8 = vector.broadcast %cst_6 : f32 to vector<8x120xf32>
    %9 = arith.mulf %8, %5 : vector<8x120xf32>
    %10 = arith.select %7, %5, %9 : vector<8x120xi1>, vector<8x120xf32>
    %11 = arith.truncf %10 : vector<8x120xf32> to vector<8x120xbf16>
    %c0_7 = arith.constant 0 : index
    %c0_8 = arith.constant 0 : index
    %12 = vector.load %arg4[%c0_7, %c0_8] : memref<120x84xbf16, #tpu.memory_space<vmem>>, vector<120x84xbf16>
    %cst_9 = arith.constant dense<0.000000e+00> : vector<8x84xf32>
    %13 = tpu.matmul %11, %12, %cst_9 {dimension_numbers = #tpu.dot_dimension_numbers<[1], [0], [0], [1], [0, 0, 1, 1], [], []>} : vector<8x120xbf16>, vector<120x84xbf16>, vector<8x84xf32> -> vector<8x84xf32>
    %c0_10 = arith.constant 0 : index
    %c0_11 = arith.constant 0 : index
    %14 = vector.load %arg5[%c0_10, %c0_11] : memref<1x84xf32, #tpu.memory_space<vmem>>, vector<1x84xf32>
    %15 = vector.broadcast %14 : vector<1x84xf32> to vector<8x84xf32>
    %16 = arith.addf %13, %15 : vector<8x84xf32>
    %cst_12 = arith.constant 0.000000e+00 : f32
    %17 = vector.broadcast %cst_12 : f32 to vector<8x84xf32>
    %18 = arith.cmpf ogt, %16, %17 : vector<8x84xf32>
    %cst_13 = arith.constant 2.000000e-01 : f32
    %19 = vector.broadcast %cst_13 : f32 to vector<8x84xf32>
    %20 = arith.mulf %19, %16 : vector<8x84xf32>
    %21 = arith.select %18, %16, %20 : vector<8x84xi1>, vector<8x84xf32>
    %22 = arith.truncf %21 : vector<8x84xf32> to vector<8x84xbf16>
    %c0_14 = arith.constant 0 : index
    %c0_15 = arith.constant 0 : index
    %23 = vector.load %arg6[%c0_14, %c0_15] : memref<84x20xbf16, #tpu.memory_space<vmem>>, vector<84x20xbf16>
    %cst_16 = arith.constant dense<0.000000e+00> : vector<8x20xf32>
    %24 = tpu.matmul %22, %23, %cst_16 {dimension_numbers = #tpu.dot_dimension_numbers<[1], [0], [0], [1], [0, 0, 1, 1], [], []>} : vector<8x84xbf16>, vector<84x20xbf16>, vector<8x20xf32> -> vector<8x20xf32>
    %c0_17 = arith.constant 0 : index
    %c0_18 = arith.constant 0 : index
    %25 = vector.load %arg7[%c0_17, %c0_18] : memref<1x20xf32, #tpu.memory_space<vmem>>, vector<1x20xf32>
    %26 = vector.broadcast %25 : vector<1x20xf32> to vector<8x20xf32>
    %27 = arith.addf %24, %26 : vector<8x20xf32>
    %cst_19 = arith.constant 0.000000e+00 : f32
    %28 = vector.broadcast %cst_19 : f32 to vector<8x20xf32>
    %29 = arith.cmpf ogt, %27, %28 : vector<8x20xf32>
    %cst_20 = arith.constant 2.000000e-01 : f32
    %30 = vector.broadcast %cst_20 : f32 to vector<8x20xf32>
    %31 = arith.mulf %30, %27 : vector<8x20xf32>
    %32 = arith.select %29, %27, %31 : vector<8x20xi1>, vector<8x20xf32>
    %33 = arith.truncf %32 : vector<8x20xf32> to vector<8x20xbf16>
    %c0_21 = arith.constant 0 : index
    %c0_22 = arith.constant 0 : index
    %34 = vector.load %arg8[%c0_21, %c0_22] : memref<20x1xbf16, #tpu.memory_space<vmem>>, vector<20x1xbf16>
    %cst_23 = arith.constant dense<0.000000e+00> : vector<8x1xf32>
    %35 = tpu.matmul %33, %34, %cst_23 {dimension_numbers = #tpu.dot_dimension_numbers<[1], [0], [0], [1], [0, 0, 1, 1], [], []>} : vector<8x20xbf16>, vector<20x1xbf16>, vector<8x1xf32> -> vector<8x1xf32>
    %c0_24 = arith.constant 0 : index
    %c0_25 = arith.constant 0 : index
    %36 = vector.load %arg9[%c0_24, %c0_25] : memref<1x1xf32, #tpu.memory_space<vmem>>, vector<1x1xf32>
    %37 = vector.broadcast %36 : vector<1x1xf32> to vector<8x1xf32>
    %38 = arith.addf %35, %37 : vector<8x1xf32>
    %39 = arith.negf %38 : vector<8x1xf32>
    %40 = math.exp %39 : vector<8x1xf32>
    %cst_26 = arith.constant 1.000000e+00 : f32
    %41 = vector.broadcast %cst_26 : f32 to vector<8x1xf32>
    %42 = arith.addf %41, %40 : vector<8x1xf32>
    %43 = arith.divf %41, %42 : vector<8x1xf32>
    %c0_27 = arith.constant 0 : index
    %c0_28 = arith.constant 0 : index
    %44 = vector.load %arg10[%c0_27, %c0_28] : memref<8x1xf32, #tpu.memory_space<vmem>>, vector<8x1xf32>
    tpu.vector_store %arg10[%c0_27, %c0_28], %43 {strides = array<i32>} : memref<8x1xf32, #tpu.memory_space<vmem>>, vector<8x1xf32>,
    return
  }
  func.func @transform_0(%arg0: i32) -> (i32, i32) {
    %c0_i32 = arith.constant 0 : i32
    %c0_i32_0 = arith.constant 0 : i32
    return %arg0, %c0_i32 : i32, i32
  }
  func.func @transform_1(%arg0: i32) -> (i32, i32) {
    %c0_i32 = arith.constant 0 : i32
    %c0_i32_0 = arith.constant 0 : i32
    %c0_i32_1 = arith.constant 0 : i32
    return %c0_i32, %c0_i32_0 : i32, i32
  }
  func.func @transform_2(%arg0: i32) -> (i32, i32) {
    %c0_i32 = arith.constant 0 : i32
    %c0_i32_0 = arith.constant 0 : i32
    %c0_i32_1 = arith.constant 0 : i32
    return %c0_i32, %c0_i32_0 : i32, i32
  }
  func.func @transform_3(%arg0: i32) -> (i32, i32) {
    %c0_i32 = arith.constant 0 : i32
    %c0_i32_0 = arith.constant 0 : i32
    %c0_i32_1 = arith.constant 0 : i32
    return %c0_i32, %c0_i32_0 : i32, i32
  }
  func.func @transform_4(%arg0: i32) -> (i32, i32) {
    %c0_i32 = arith.constant 0 : i32
    %c0_i32_0 = arith.constant 0 : i32
    %c0_i32_1 = arith.constant 0 : i32
    return %c0_i32, %c0_i32_0 : i32, i32
  }
  func.func @transform_5(%arg0: i32) -> (i32, i32) {
    %c0_i32 = arith.constant 0 : i32
    %c0_i32_0 = arith.constant 0 : i32
    %c0_i32_1 = arith.constant 0 : i32
    return %c0_i32, %c0_i32_0 : i32, i32
  }
  func.func @transform_6(%arg0: i32) -> (i32, i32) {
    %c0_i32 = arith.constant 0 : i32
    %c0_i32_0 = arith.constant 0 : i32
    %c0_i32_1 = arith.constant 0 : i32
    return %c0_i32, %c0_i32_0 : i32, i32
  }
  func.func @transform_7(%arg0: i32) -> (i32, i32) {
    %c0_i32 = arith.constant 0 : i32
    %c0_i32_0 = arith.constant 0 : i32
    %c0_i32_1 = arith.constant 0 : i32
    return %c0_i32, %c0_i32_0 : i32, i32
  }
  func.func @transform_8(%arg0: i32) -> (i32, i32) {
    %c0_i32 = arith.constant 0 : i32
    %c0_i32_0 = arith.constant 0 : i32
    %c0_i32_1 = arith.constant 0 : i32
    return %c0_i32, %c0_i32_0 : i32, i32
  }
  func.func @transform_9(%arg0: i32) -> (i32, i32) {
    %c0_i32 = arith.constant 0 : i32
    %c0_i32_0 = arith.constant 0 : i32
    return %arg0, %c0_i32 : i32, i32
  }
}

</mosaic_0001>

<llo_original>
// kernel: lenet_forward.3
$region0: #{lenet_forward.3}
  #allocation0 [shape = 'u32[]', space=smem, size = 0x4, offset = 0x4, fixed_abs, tag = 'smem constant byte address 0x4 - core index']
  #allocation1 [shape = 'u32[72,128]{1,0:T(1,128)}', space=vmem, size = 0x9000, scoped, tag = 'internal scratch']
  %s0 = inlined_call_operand.vmem [shape: bf16[4,344,49], index: 0, kind: input, shape index: {}]
  %s1 = inlined_call_operand.vmem [shape: bf16[49,6], index: 1, kind: input, shape index: {}]
  %s2 = inlined_call_operand.vmem [shape: f32[1,6], index: 2, kind: input, shape index: {}]
  %s3 = inlined_call_operand.vmem [shape: f32[344,6], index: 3, kind: output, shape index: {}]
  %s4 = sld [smem:[#allocation0]]
  $region22: #{lenet_forward.3} parent=0
    _
  %s6 = ssub.s32 1, %s4
  %s7 = scalar_select 0, %s6, %s4
  // Predicated region
  $region2: #{lenet_forward.3} parent=0 // pred_check
    _
  $region3: #{lenet_forward.3} parent=0 // pred_check_branch
    %9 = sbr.rel (0) target = $region5
  $region4: #{lenet_forward.3} parent=0 // pred_region
    _
  $region5: #{lenet_forward.3} parent=0 // pred_fallthru
    _
  // Predicated region
  $region6: #{lenet_forward.3} parent=0 // pred_check
    _
  $region7: #{lenet_forward.3} parent=0 // pred_check_branch
    %11 = sbr.rel (0) target = $region9
  $region8: #{lenet_forward.3} parent=0 // pred_region
    _
  $region9: #{lenet_forward.3} parent=0 // pred_fallthru
    _
  // Predicated region
  $region10: #{lenet_forward.3} parent=0 // pred_check
    _
  $region11: #{lenet_forward.3} parent=0 // pred_check_branch
    %13 = sbr.rel (0) target = $region13
  $region12: #{lenet_forward.3} parent=0 // pred_region
    _
  $region13: #{lenet_forward.3} parent=0 // pred_fallthru
    _
  %v15 = vld [vmem:[%s0] sm:$0xf]
  %v16 = vld [vmem:[%s0 + $0x4] sm:$0xf]
  %v17 = vld [vmem:[%s0 + $0x8] sm:$0xf]
  %v18 = vld [vmem:[%s0 + $0xc] sm:$0xf]
  %v19 = vld [vmem:[%s0 + $0x10] sm:$0xf]
  %v20 = vld [vmem:[%s0 + $0x14] sm:$0xf]
  %v21 = vld [vmem:[%s0 + $0x18] sm:$0xf]
  %v22 = vld [vmem:[%s0 + $0x1c] sm:$0xf]
  %v23 = vld [vmem:[%s0 + $0x20] sm:$0xf]
  %v24 = vld [vmem:[%s0 + $0x24] sm:$0xf]
  %v25 = vld [vmem:[%s0 + $0x28] sm:$0xf]
  %v26 = vld [vmem:[%s0 + $0x2c] sm:$0xf]
  %v27 = vld [vmem:[%s0 + $0x30] sm:$0xf]
  %v28 = vld [vmem:[%s0 + $0x34] sm:$0xf]
  %v29 = vld [vmem:[%s0 + $0x38] sm:$0xf]
  %v30 = vld [vmem:[%s0 + $0x3c] sm:$0xf]
  %v31 = vld [vmem:[%s0 + $0x40] sm:$0xf]
  %v32 = vld [vmem:[%s0 + $0x44] sm:$0xf]
  %v33 = vld [vmem:[%s0 + $0x48] sm:$0xf]
  %v34 = vld [vmem:[%s0 + $0x4c] sm:$0xf]
  %v35 = vld [vmem:[%s0 + $0x50] sm:$0xf]
  %v36 = vld [vmem:[%s0 + $0x54] sm:$0xf]
  %v37 = vld [vmem:[%s0 + $0x58] sm:$0xf]
  %v38 = vld [vmem:[%s0 + $0x5c] sm:$0xf]
  %v39 = vld [vmem:[%s0 + $0x60] sm:$0xf]
  %v40 = vld [vmem:[%s0 + $0x64] sm:$0xf]
  %v41 = vld [vmem:[%s0 + $0x68] sm:$0xf]
  %v42 = vld [vmem:[%s0 + $0x6c] sm:$0xf]
  %v43 = vld [vmem:[%s0 + $0x70] sm:$0xf]
  %v44 = vld [vmem:[%s0 + $0x74] sm:$0xf]
  %v45 = vld [vmem:[%s0 + $0x78] sm:$0xf]
  %v46 = vld [vmem:[%s0 + $0x7c] sm:$0xf]
  %v47 = vld [vmem:[%s0 + $0x80] sm:$0xf]
  %v48 = vld [vmem:[%s0 + $0x84] sm:$0xf]
  %v49 = vld [vmem:[%s0 + $0x88] sm:$0xf]
  %v50 = vld [vmem:[%s0 + $0x8c] sm:$0xf]
  %v51 = vld [vmem:[%s0 + $0x90] sm:$0xf]
  %v52 = vld [vmem:[%s0 + $0x94] sm:$0xf]
  %v53 = vld [vmem:[%s0 + $0x98] sm:$0xf]
  %v54 = vld [vmem:[%s0 + $0x9c] sm:$0xf]
  %v55 = vld [vmem:[%s0 + $0xa0] sm:$0xf]
  %v56 = vld [vmem:[%s0 + $0xa4] sm:$0xf]
  %v57 = vld [vmem:[%s0 + $0xa8] sm:$0xf]
  %v58 = vld [vmem:[%s0 + $0xac] sm:$0xf]
  %v59 = vld [vmem:[%s0 + $0xb0] sm:$0xf]
  %v60 = vld [vmem:[%s0 + $0xb4] sm:$0xf]
  %v61 = vld [vmem:[%s0 + $0xb8] sm:$0xf]
  %v62 = vld [vmem:[%s0 + $0xbc] sm:$0xf]
  %v63 = vld [vmem:[%s0 + $0xc0] sm:$0xf]
  %v64 = vld [vmem:[%s0 + $0xc4] sm:$0xf]
  %v65 = vld [vmem:[%s0 + $0xc8] sm:$0xf]
  %v66 = vld [vmem:[%s0 + $0xcc] sm:$0xf]
  %v67 = vld [vmem:[%s0 + $0xd0] sm:$0xf]
  %v68 = vld [vmem:[%s0 + $0xd4] sm:$0xf]
  %v69 = vld [vmem:[%s0 + $0xd8] sm:$0xf]
  %v70 = vld [vmem:[%s0 + $0xdc] sm:$0xf]
  %v71 = vld [vmem:[%s0 + $0xe0] sm:$0xf]
  %v72 = vld [vmem:[%s0 + $0xe4] sm:$0xf]
  %v73 = vld [vmem:[%s0 + $0xe8] sm:$0xf]
  %v74 = vld [vmem:[%s0 + $0xec] sm:$0xf]
  %v75 = vld [vmem:[%s0 + $0xf0] sm:$0xf]
  %v76 = vld [vmem:[%s0 + $0xf4] sm:$0xf]
  %v77 = vld [vmem:[%s0 + $0xf8] sm:$0xf]
  %v78 = vld [vmem:[%s0 + $0xfc] sm:$0xf]
  %v79 = vld [vmem:[%s0 + $0x100] sm:$0xf]
  %v80 = vld [vmem:[%s0 + $0x104] sm:$0xf]
  %v81 = vld [vmem:[%s0 + $0x108] sm:$0xf]
  %v82 = vld [vmem:[%s0 + $0x10c] sm:$0xf]
  %v83 = vld [vmem:[%s0 + $0x110] sm:$0xf]
  %v84 = vld [vmem:[%s0 + $0x114] sm:$0xf]
  %v85 = vld [vmem:[%s0 + $0x118] sm:$0xf]
  %v86 = vld [vmem:[%s0 + $0x11c] sm:$0xf]
  %v87 = vld [vmem:[%s0 + $0x120] sm:$0xf]
  %v88 = vld [vmem:[%s0 + $0x124] sm:$0xf]
  %v89 = vld [vmem:[%s0 + $0x128] sm:$0xf]
  %v90 = vld [vmem:[%s0 + $0x12c] sm:$0xf]
  %v91 = vld [vmem:[%s0 + $0x130] sm:$0xf]
  %v92 = vld [vmem:[%s0 + $0x134] sm:$0xf]
  %v93 = vld [vmem:[%s0 + $0x138] sm:$0xf]
  %v94 = vld [vmem:[%s0 + $0x13c] sm:$0xf]
  %v95 = vld [vmem:[%s0 + $0x140] sm:$0xf]
  %v96 = vld [vmem:[%s0 + $0x144] sm:$0xf]
  %v97 = vld [vmem:[%s0 + $0x148] sm:$0xf]
  %v98 = vld [vmem:[%s0 + $0x14c] sm:$0xf]
  %v99 = vld [vmem:[%s0 + $0x150] sm:$0xf]
  %v100 = vld [vmem:[%s0 + $0x154] sm:$0xf]
  %v101 = vld [vmem:[%s0 + $0x158] sm:$0xf]
  %v102 = vld [vmem:[%s0 + $0x15c] sm:$0xf]
  %v103 = vld [vmem:[%s0 + $0x160] sm:$0xf]
  %v104 = vld [vmem:[%s0 + $0x164] sm:$0xf]
  %v105 = vld [vmem:[%s0 + $0x168] sm:$0xf]
  %v106 = vld [vmem:[%s0 + $0x16c] sm:$0xf]
  %v107 = vld [vmem:[%s0 + $0x170] sm:$0xf]
  %v108 = vld [vmem:[%s0 + $0x174] sm:$0xf]
  %v109 = vld [vmem:[%s0 + $0x178] sm:$0xf]
  %v110 = vld [vmem:[%s0 + $0x17c] sm:$0xf]
  %v111 = vld [vmem:[%s0 + $0x180] sm:$0xf]
  %v112 = vld [vmem:[%s0 + $0x184] sm:$0xf]
  %v113 = vld [vmem:[%s0 + $0x188] sm:$0xf]
  %v114 = vld [vmem:[%s0 + $0x18c] sm:$0xf]
  %v115 = vld [vmem:[%s0 + $0x190] sm:$0xf]
  %v116 = vld [vmem:[%s0 + $0x194] sm:$0xf]
  %v117 = vld [vmem:[%s0 + $0x198] sm:$0xf]
  %v118 = vld [vmem:[%s0 + $0x19c] sm:$0xf]
  %v119 = vld [vmem:[%s0 + $0x1a0] sm:$0xf]
  %v120 = vld [vmem:[%s0 + $0x1a4] sm:$0xf]
  %v121 = vld [vmem:[%s0 + $0x1a8] sm:$0xf]
  %v122 = vld [vmem:[%s0 + $0x1ac] sm:$0xf]
  %v123 = vld [vmem:[%s0 + $0x1b0] sm:$0xf]
  %v124 = vld [vmem:[%s0 + $0x1b4] sm:$0xf]
  %v125 = vld [vmem:[%s0 + $0x1b8] sm:$0xf]
  %v126 = vld [vmem:[%s0 + $0x1bc] sm:$0xf]
  %v127 = vld [vmem:[%s0 + $0x1c0] sm:$0xf]
  %v128 = vld [vmem:[%s0 + $0x1c4] sm:$0xf]
  %v129 = vld [vmem:[%s0 + $0x1c8] sm:$0xf]
  %v130 = vld [vmem:[%s0 + $0x1cc] sm:$0xf]
  %v131 = vld [vmem:[%s0 + $0x1d0] sm:$0xf]
  %v132 = vld [vmem:[%s0 + $0x1d4] sm:$0xf]
  %v133 = vld [vmem:[%s0 + $0x1d8] sm:$0xf]
  %v134 = vld [vmem:[%s0 + $0x1dc] sm:$0xf]
  %v135 = vld [vmem:[%s0 + $0x1e0] sm:$0xf]
  %v136 = vld [vmem:[%s0 + $0x1e4] sm:$0xf]
  %v137 = vld [vmem:[%s0 + $0x1e8] sm:$0xf]
  %v138 = vld [vmem:[%s0 + $0x1ec] sm:$0xf]
  %v139 = vld [vmem:[%s0 + $0x1f0] sm:$0xf]
  %v140 = vld [vmem:[%s0 + $0x1f4] sm:$0xf]
  %v141 = vld [vmem:[%s0 + $0x1f8] sm:$0xf]
  %v142 = vld [vmem:[%s0 + $0x1fc] sm:$0xf]
  %v143 = vld [vmem:[%s0 + $0x200] sm:$0xf]
  %v144 = vld [vmem:[%s0 + $0x204] sm:$0xf]
  %v145 = vld [vmem:[%s0 + $0x208] sm:$0xf]
  %v146 = vld [vmem:[%s0 + $0x20c] sm:$0xf]
  %v147 = vld [vmem:[%s0 + $0x210] sm:$0xf]
  %v148 = vld [vmem:[%s0 + $0x214] sm:$0xf]
  %v149 = vld [vmem:[%s0 + $0x218] sm:$0xf]
  %v150 = vld [vmem:[%s0 + $0x21c] sm:$0xf]
  %v151 = vld [vmem:[%s0 + $0x220] sm:$0xf]
  %v152 = vld [vmem:[%s0 + $0x224] sm:$0xf]
  %v153 = vld [vmem:[%s0 + $0x228] sm:$0xf]
  %v154 = vld [vmem:[%s0 + $0x22c] sm:$0xf]
  %v155 = vld [vmem:[%s0 + $0x230] sm:$0xf]
  %v156 = vld [vmem:[%s0 + $0x234] sm:$0xf]
  %v157 = vld [vmem:[%s0 + $0x238] sm:$0xf]
  %v158 = vld [vmem:[%s0 + $0x23c] sm:$0xf]
  %v159 = vld [vmem:[%s0 + $0x240] sm:$0xf]
  %v160 = vld [vmem:[%s0 + $0x244] sm:$0xf]
  %v161 = vld [vmem:[%s0 + $0x248] sm:$0xf]
  %v162 = vld [vmem:[%s0 + $0x24c] sm:$0xf]
  %v163 = vld [vmem:[%s0 + $0x250] sm:$0xf]
  %v164 = vld [vmem:[%s0 + $0x254] sm:$0xf]
  %v165 = vld [vmem:[%s0 + $0x258] sm:$0xf]
  %v166 = vld [vmem:[%s0 + $0x25c] sm:$0xf]
  %v167 = vld [vmem:[%s0 + $0x260] sm:$0xf]
  %v168 = vld [vmem:[%s0 + $0x264] sm:$0xf]
  %v169 = vld [vmem:[%s0 + $0x268] sm:$0xf]
  %v170 = vld [vmem:[%s0 + $0x26c] sm:$0xf]
  %v171 = vld [vmem:[%s0 + $0x270] sm:$0xf]
  %v172 = vld [vmem:[%s0 + $0x274] sm:$0xf]
  %v173 = vld [vmem:[%s0 + $0x278] sm:$0xf]
  %v174 = vld [vmem:[%s0 + $0x27c] sm:$0xf]
  %v175 = vld [vmem:[%s0 + $0x280] sm:$0xf]
  %v176 = vld [vmem:[%s0 + $0x284] sm:$0xf]
  %v177 = vld [vmem:[%s0 + $0x288] sm:$0xf]
  %v178 = vld [vmem:[%s0 + $0x28c] sm:$0xf]
  %v179 = vld [vmem:[%s0 + $0x290] sm:$0xf]
  %v180 = vld [vmem:[%s0 + $0x294] sm:$0xf]
  %v181 = vld [vmem:[%s0 + $0x298] sm:$0xf]
  %v182 = vld [vmem:[%s0 + $0x29c] sm:$0xf]
  %v183 = vld [vmem:[%s0 + $0x2a0] sm:$0xf]
  %v184 = vld [vmem:[%s0 + $0x2a4] sm:$0xf]
  %v185 = vld [vmem:[%s0 + $0x2a8] sm:$0xf]
  %v186 = vld [vmem:[%s0 + $0x2ac] sm:$0xf]
  %v187 = vld [vmem:[%s1] sm:$0xf]
  %v188 = vld [vmem:[%s1 + $0x4] sm:$0xf]
  %v189 = vld [vmem:[%s1 + $0x8] sm:$0xf]
  %v190 = vld [vmem:[%s1 + $0xc] sm:$0xf]
  %v191 = vld [vmem:[%s1 + $0x10] sm:$0xf]
  %v192 = vld [vmem:[%s1 + $0x14] sm:$0xf]
  %v193 = vld [vmem:[%s1 + $0x18] sm:$0x1]
  %v194 = vld [vmem:[%s2] sm:$0x1]
  %v196 = vperm.slane %v194, 0
  %v370 = vunpack.c.l.b16 %v15
  %v371 = vunpack.c.l.b16 %v16
  %v372 = vunpack.c.l.b16 %v17
  %v373 = vunpack.c.l.b16 %v18
  %v374 = vunpack.c.l.b16 %v19
  %v375 = vunpack.c.l.b16 %v20
  %v376 = vunpack.c.l.b16 %v21
  %v377 = vunpack.c.l.b16 %v22
  %v378 = vunpack.c.l.b16 %v23
  %v379 = vunpack.c.l.b16 %v24
  %v380 = vunpack.c.l.b16 %v25
  %v381 = vunpack.c.l.b16 %v26
  %v382 = vunpack.c.l.b16 %v27
  %v383 = vunpack.c.l.b16 %v28
  %v384 = vunpack.c.l.b16 %v29
  %v385 = vunpack.c.l.b16 %v30
  %v386 = vunpack.c.l.b16 %v31
  %v387 = vunpack.c.l.b16 %v32
  %v388 = vunpack.c.l.b16 %v33
  %v389 = vunpack.c.l.b16 %v34
  %v390 = vunpack.c.l.b16 %v35
  %v391 = vunpack.c.l.b16 %v36
  %v392 = vunpack.c.l.b16 %v37
  %v393 = vunpack.c.l.b16 %v38
  %v394 = vunpack.c.l.b16 %v39
  %v395 = vunpack.c.l.b16 %v40
  %v396 = vunpack.c.l.b16 %v41
  %v397 = vunpack.c.l.b16 %v42
  %v398 = vunpack.c.l.b16 %v43
  %v399 = vunpack.c.l.b16 %v44
  %v400 = vunpack.c.l.b16 %v45
  %v401 = vunpack.c.l.b16 %v46
  %v402 = vunpack.c.l.b16 %v47
  %v403 = vunpack.c.l.b16 %v48
  %v404 = vunpack.c.l.b16 %v49
  %v405 = vunpack.c.l.b16 %v50
  %v406 = vunpack.c.l.b16 %v51
  %v407 = vunpack.c.l.b16 %v52
  %v408 = vunpack.c.l.b16 %v53
  %v409 = vunpack.c.l.b16 %v54
  %v410 = vunpack.c.l.b16 %v55
  %v411 = vunpack.c.l.b16 %v56
  %v412 = vunpack.c.l.b16 %v57
  %v413 = vunpack.c.l.b16 %v58
  %v414 = vunpack.c.l.b16 %v59
  %v415 = vunpack.c.l.b16 %v60
  %v416 = vunpack.c.l.b16 %v61
  %v417 = vunpack.c.l.b16 %v62
  %v418 = vunpack.c.l.b16 %v63
  %v419 = vunpack.c.l.b16 %v64
  %v420 = vunpack.c.l.b16 %v65
  %v421 = vunpack.c.l.b16 %v66
  %v422 = vunpack.c.l.b16 %v67
  %v423 = vunpack.c.l.b16 %v68
  %v424 = vunpack.c.l.b16 %v69
  %v425 = vunpack.c.l.b16 %v70
  %v426 = vunpack.c.l.b16 %v71
  %v427 = vunpack.c.l.b16 %v72
  %v428 = vunpack.c.l.b16 %v73
  %v429 = vunpack.c.l.b16 %v74
  %v430 = vunpack.c.l.b16 %v75
  %v431 = vunpack.c.l.b16 %v76
  %v432 = vunpack.c.l.b16 %v77
  %v433 = vunpack.c.l.b16 %v78
  %v434 = vunpack.c.l.b16 %v79
  %v435 = vunpack.c.l.b16 %v80
  %v436 = vunpack.c.l.b16 %v81
  %v437 = vunpack.c.l.b16 %v82
  %v438 = vunpack.c.l.b16 %v83
  %v439 = vunpack.c.l.b16 %v84
  %v440 = vunpack.c.l.b16 %v85
  %v441 = vunpack.c.l.b16 %v86
  %v442 = vunpack.c.l.b16 %v87
  %v443 = vunpack.c.l.b16 %v88
  %v444 = vunpack.c.l.b16 %v89
  %v445 = vunpack.c.l.b16 %v90
  %v446 = vunpack.c.l.b16 %v91
  %v447 = vunpack.c.l.b16 %v92
  %v448 = vunpack.c.l.b16 %v93
  %v449 = vunpack.c.l.b16 %v94
  %v450 = vunpack.c.l.b16 %v95
  %v451 = vunpack.c.l.b16 %v96
  %v452 = vunpack.c.l.b16 %v97
  %v453 = vunpack.c.l.b16 %v98
  %v454 = vunpack.c.l.b16 %v99
  %v455 = vunpack.c.l.b16 %v100
  %v456 = vunpack.c.l.b16 %v101
  %v457 = vunpack.c.l.b16 %v102
  %v458 = vunpack.c.l.b16 %v103
  %v459 = vunpack.c.l.b16 %v104
  %v460 = vunpack.c.l.b16 %v105
  %v461 = vunpack.c.l.b16 %v106
  %v462 = vunpack.c.l.b16 %v107
  %v463 = vunpack.c.l.b16 %v108
  %v464 = vunpack.c.l.b16 %v109
  %v465 = vunpack.c.l.b16 %v110
  %v466 = vunpack.c.l.b16 %v111
  %v467 = vunpack.c.l.b16 %v112
  %v468 = vunpack.c.l.b16 %v113
  %v469 = vunpack.c.l.b16 %v114
  %v470 = vunpack.c.l.b16 %v115
  %v471 = vunpack.c.l.b16 %v116
  %v472 = vunpack.c.l.b16 %v117
  %v473 = vunpack.c.l.b16 %v118
  %v474 = vunpack.c.l.b16 %v119
  %v475 = vunpack.c.l.b16 %v120
  %v476 = vunpack.c.l.b16 %v121
  %v477 = vunpack.c.l.b16 %v122
  %v478 = vunpack.c.l.b16 %v123
  %v479 = vunpack.c.l.b16 %v124
  %v480 = vunpack.c.l.b16 %v125
  %v481 = vunpack.c.l.b16 %v126
  %v482 = vunpack.c.l.b16 %v127
  %v483 = vunpack.c.l.b16 %v128
  %v484 = vunpack.c.l.b16 %v129
  %v485 = vunpack.c.l.b16 %v130
  %v486 = vunpack.c.l.b16 %v131
  %v487 = vunpack.c.l.b16 %v132
  %v488 = vunpack.c.l.b16 %v133
  %v489 = vunpack.c.l.b16 %v134
  %v490 = vunpack.c.l.b16 %v135
  %v491 = vunpack.c.l.b16 %v136
  %v492 = vunpack.c.l.b16 %v137
  %v493 = vunpack.c.l.b16 %v138
  %v494 = vunpack.c.l.b16 %v139
  %v495 = vunpack.c.l.b16 %v140
  %v496 = vunpack.c.l.b16 %v141
  %v497 = vunpack.c.l.b16 %v142
  %v498 = vunpack.c.l.b16 %v143
  %v499 = vunpack.c.l.b16 %v144
  %v500 = vunpack.c.l.b16 %v145
  %v501 = vunpack.c.l.b16 %v146
  %v502 = vunpack.c.l.b16 %v147
  %v503 = vunpack.c.l.b16 %v148
  %v504 = vunpack.c.l.b16 %v149
  %v505 = vunpack.c.l.b16 %v150
  %v506 = vunpack.c.l.b16 %v151
  %v507 = vunpack.c.l.b16 %v152
  %v508 = vunpack.c.l.b16 %v153
  %v509 = vunpack.c.l.b16 %v154
  %v510 = vunpack.c.l.b16 %v155
  %v511 = vunpack.c.l.b16 %v156
  %v512 = vunpack.c.l.b16 %v157
  %v513 = vunpack.c.l.b16 %v158
  %v514 = vunpack.c.l.b16 %v159
  %v515 = vunpack.c.l.b16 %v160
  %v516 = vunpack.c.l.b16 %v161
  %v517 = vunpack.c.l.b16 %v162
  %v518 = vunpack.c.l.b16 %v163
  %v519 = vunpack.c.l.b16 %v164
  %v520 = vunpack.c.l.b16 %v165
  %v521 = vunpack.c.l.b16 %v166
  %v522 = vunpack.c.l.b16 %v167
  %v523 = vunpack.c.l.b16 %v168
  %v524 = vunpack.c.l.b16 %v169
  %v525 = vunpack.c.l.b16 %v170
  %v526 = vunpack.c.l.b16 %v171
  %v527 = vunpack.c.l.b16 %v172
  %v528 = vunpack.c.l.b16 %v173
  %v529 = vunpack.c.l.b16 %v174
  %v530 = vunpack.c.l.b16 %v175
  %v531 = vunpack.c.l.b16 %v176
  %v532 = vunpack.c.l.b16 %v177
  %v533 = vunpack.c.l.b16 %v178
  %v534 = vunpack.c.l.b16 %v179
  %v535 = vunpack.c.l.b16 %v180
  %v536 = vunpack.c.l.b16 %v181
  %v537 = vunpack.c.l.b16 %v182
  %v538 = vunpack.c.l.b16 %v183
  %v539 = vunpack.c.l.b16 %v184
  %v540 = vunpack.c.l.b16 %v185
  %v541 = vunpack.c.l.b16 %v186
  %v542 = vpack.c.b16 %v371, %v370
  %v543 = vpack.c.b16 %v373, %v372
  %v544 = vpack.c.b16 %v375, %v374
  %v545 = vpack.c.b16 %v377, %v376
  %v546 = vpack.c.b16 %v379, %v378
  %v547 = vpack.c.b16 %v381, %v380
  %v548 = vpack.c.b16 %v383, %v382
  %v549 = vpack.c.b16 %v385, %v384
  %v550 = vpack.c.b16 %v387, %v386
  %v551 = vpack.c.b16 %v389, %v388
  %v552 = vpack.c.b16 %v391, %v390
  %v553 = vpack.c.b16 %v393, %v392
  %v554 = vpack.c.b16 %v395, %v394
  %v555 = vpack.c.b16 %v397, %v396
  %v556 = vpack.c.b16 %v399, %v398
  %v557 = vpack.c.b16 %v401, %v400
  %v558 = vpack.c.b16 %v403, %v402
  %v559 = vpack.c.b16 %v405, %v404
  %v560 = vpack.c.b16 %v407, %v406
  %v561 = vpack.c.b16 %v409, %v408
  %v562 = vpack.c.b16 %v411, %v410
  %v563 = vpack.c.b16 %v413, %v412
  %v564 = vpack.c.b16 %v415, %v414
  %v565 = vpack.c.b16 %v417, %v416
  %v566 = vpack.c.b16 %v419, %v418
  %v567 = vpack.c.b16 %v421, %v420
  %v568 = vpack.c.b16 %v423, %v422
  %v569 = vpack.c.b16 %v425, %v424
  %v570 = vpack.c.b16 %v427, %v426
  %v571 = vpack.c.b16 %v429, %v428
  %v572 = vpack.c.b16 %v431, %v430
  %v573 = vpack.c.b16 %v433, %v432
  %v574 = vpack.c.b16 %v435, %v434
  %v575 = vpack.c.b16 %v437, %v436
  %v576 = vpack.c.b16 %v439, %v438
  %v577 = vpack.c.b16 %v441, %v440
  %v578 = vpack.c.b16 %v443, %v442
  %v579 = vpack.c.b16 %v445, %v444
  %v580 = vpack.c.b16 %v447, %v446
  %v581 = vpack.c.b16 %v449, %v448
  %v582 = vpack.c.b16 %v451, %v450
  %v583 = vpack.c.b16 %v453, %v452
  %v584 = vpack.c.b16 %v455, %v454
  %v585 = vpack.c.b16 %v457, %v456
  %v586 = vpack.c.b16 %v459, %v458
  %v587 = vpack.c.b16 %v461, %v460
  %v588 = vpack.c.b16 %v463, %v462
  %v589 = vpack.c.b16 %v465, %v464
  %v590 = vpack.c.b16 %v467, %v466
  %v591 = vpack.c.b16 %v469, %v468
  %v592 = vpack.c.b16 %v471, %v470
  %v593 = vpack.c.b16 %v473, %v472
  %v594 = vpack.c.b16 %v475, %v474
  %v595 = vpack.c.b16 %v477, %v476
  %v596 = vpack.c.b16 %v479, %v478
  %v597 = vpack.c.b16 %v481, %v480
  %v598 = vpack.c.b16 %v483, %v482
  %v599 = vpack.c.b16 %v485, %v484
  %v600 = vpack.c.b16 %v487, %v486
  %v601 = vpack.c.b16 %v489, %v488
  %v602 = vpack.c.b16 %v491, %v490
  %v603 = vpack.c.b16 %v493, %v492
  %v604 = vpack.c.b16 %v495, %v494
  %v605 = vpack.c.b16 %v497, %v496
  %v606 = vpack.c.b16 %v499, %v498
  %v607 = vpack.c.b16 %v501, %v500
  %v608 = vpack.c.b16 %v503, %v502
  %v609 = vpack.c.b16 %v505, %v504
  %v610 = vpack.c.b16 %v507, %v506
  %v611 = vpack.c.b16 %v509, %v508
  %v612 = vpack.c.b16 %v511, %v510
  %v613 = vpack.c.b16 %v513, %v512
  %v614 = vpack.c.b16 %v515, %v514
  %v615 = vpack.c.b16 %v517, %v516
  %v616 = vpack.c.b16 %v519, %v518
  %v617 = vpack.c.b16 %v521, %v520
  %v618 = vpack.c.b16 %v523, %v522
  %v619 = vpack.c.b16 %v525, %v524
  %v620 = vpack.c.b16 %v527, %v526
  %v621 = vpack.c.b16 %v529, %v528
  %v622 = vpack.c.b16 %v531, %v530
  %v623 = vpack.c.b16 %v533, %v532
  %v624 = vpack.c.b16 %v535, %v534
  %v625 = vpack.c.b16 %v537, %v536
  %v626 = vpack.c.b16 %v539, %v538
  %v627 = vpack.c.b16 %v541, %v540
  %v635 = vunpack.c.l.b16 %v187
  %v636 = vunpack.c.l.b16 %v188
  %v637 = vunpack.c.l.b16 %v189
  %v638 = vunpack.c.l.b16 %v190
  %v639 = vunpack.c.l.b16 %v191
  %v640 = vunpack.c.l.b16 %v192
  %v641 = vunpack.c.l.b16 %v193
  %v642 = vpack.c.b16 %v636, %v635
  %v643 = vpack.c.b16 %v638, %v637
  %v644 = vpack.c.b16 %v640, %v639
  %v645 = vpack.c.b16 %v641, %v641
  %vm649 = vcmask 400384
  %v651 = vsel %vm649, %v542, 0
  %v654 = vsel %vm649, %v543, 0
  %v657 = vsel %vm649, %v544, 0
  %v660 = vsel %vm649, %v545, 0
  %v663 = vsel %vm649, %v546, 0
  %v666 = vsel %vm649, %v547, 0
  %v669 = vsel %vm649, %v548, 0
  %v672 = vsel %vm649, %v549, 0
  %v675 = vsel %vm649, %v550, 0
  %v678 = vsel %vm649, %v551, 0
  %v681 = vsel %vm649, %v552, 0
  %v684 = vsel %vm649, %v553, 0
  %v687 = vsel %vm649, %v554, 0
  %v690 = vsel %vm649, %v555, 0
  %v693 = vsel %vm649, %v556, 0
  %v696 = vsel %vm649, %v557, 0
  %v699 = vsel %vm649, %v558, 0
  %v702 = vsel %vm649, %v559, 0
  %v705 = vsel %vm649, %v560, 0
  %v708 = vsel %vm649, %v561, 0
  %v711 = vsel %vm649, %v562, 0
  %v714 = vsel %vm649, %v563, 0
  %v717 = vsel %vm649, %v564, 0
  %v720 = vsel %vm649, %v565, 0
  %v723 = vsel %vm649, %v566, 0
  %v726 = vsel %vm649, %v567, 0
  %v729 = vsel %vm649, %v568, 0
  %v732 = vsel %vm649, %v569, 0
  %v735 = vsel %vm649, %v570, 0
  %v738 = vsel %vm649, %v571, 0
  %v741 = vsel %vm649, %v572, 0
  %v744 = vsel %vm649, %v573, 0
  %v747 = vsel %vm649, %v574, 0
  %v750 = vsel %vm649, %v575, 0
  %v753 = vsel %vm649, %v576, 0
  %v756 = vsel %vm649, %v577, 0
  %v759 = vsel %vm649, %v578, 0
  %v762 = vsel %vm649, %v579, 0
  %v765 = vsel %vm649, %v580, 0
  %v768 = vsel %vm649, %v581, 0
  %v771 = vsel %vm649, %v582, 0
  %v774 = vsel %vm649, %v583, 0
  %v777 = vsel %vm649, %v584, 0
  %v780 = vsel %vm649, %v585, 0
  %v783 = vsel %vm649, %v586, 0
  %v786 = vsel %vm649, %v587, 0
  %v789 = vsel %vm649, %v588, 0
  %v792 = vsel %vm649, %v589, 0
  %v795 = vsel %vm649, %v590, 0
  %v798 = vsel %vm649, %v591, 0
  %v801 = vsel %vm649, %v592, 0
  %v804 = vsel %vm649, %v593, 0
  %v807 = vsel %vm649, %v594, 0
  %v810 = vsel %vm649, %v595, 0
  %v813 = vsel %vm649, %v596, 0
  %v816 = vsel %vm649, %v597, 0
  %v819 = vsel %vm649, %v598, 0
  %v822 = vsel %vm649, %v599, 0
  %v825 = vsel %vm649, %v600, 0
  %v828 = vsel %vm649, %v601, 0
  %v831 = vsel %vm649, %v602, 0
  %v834 = vsel %vm649, %v603, 0
  %v837 = vsel %vm649, %v604, 0
  %v840 = vsel %vm649, %v605, 0
  %v843 = vsel %vm649, %v606, 0
  %v846 = vsel %vm649, %v607, 0
  %v849 = vsel %vm649, %v608, 0
  %v852 = vsel %vm649, %v609, 0
  %v855 = vsel %vm649, %v610, 0
  %v858 = vsel %vm649, %v611, 0
  %v861 = vsel %vm649, %v612, 0
  %v864 = vsel %vm649, %v613, 0
  %v867 = vsel %vm649, %v614, 0
  %v870 = vsel %vm649, %v615, 0
  %v873 = vsel %vm649, %v616, 0
  %v876 = vsel %vm649, %v617, 0
  %v879 = vsel %vm649, %v618, 0
  %v882 = vsel %vm649, %v619, 0
  %v885 = vsel %vm649, %v620, 0
  %v888 = vsel %vm649, %v621, 0
  %v891 = vsel %vm649, %v622, 0
  %v894 = vsel %vm649, %v623, 0
  %v897 = vsel %vm649, %v624, 0
  %v900 = vsel %vm649, %v625, 0
  %v903 = vsel %vm649, %v626, 0
  %v906 = vsel %vm649, %v627, 0
  %vm908 = vcmask 1040384
  %v909 = vsel 0, 4294967295, 65535
  %v910 = vsel %vm908, %v909, 0
  %v912 = vand.u32 %v645, %v910
  %914 = vmatpush.bf16.msra.mxu0 0
  %915 = vmatpush.bf16.msra.mxu0 0
  %916 = vmatpush.bf16.msra.mxu0 0
  %917 = vmatpush.bf16.msra.mxu0 0
  %918 = vmatpush.bf16.msra.mxu0 %v912
  %919 = vmatpush.bf16.msra.mxu0 %v644
  %920 = vmatpush.bf16.msra.mxu0 %v643
  %921 = vmatpush.bf16.msra.mxu0 %v642
  %922 = vmatmul.bf16.gmra.mxu0 %v651
  %v923 = vpop.f32.mrf.mxu0
  %v924 = vadd.f32 %v196, %v923
  %v925 = vpop.f32.mrf.mxu0
  %v926 = vadd.f32 %v196, %v925
  %927 = vmatmul.bf16.gmra.mxu0 %v654
  %v928 = vpop.f32.mrf.mxu0
  %v929 = vadd.f32 %v196, %v928
  %v930 = vpop.f32.mrf.mxu0
  %v931 = vadd.f32 %v196, %v930
  %932 = vmatmul.bf16.gmra.mxu0 %v657
  %v933 = vpop.f32.mrf.mxu0
  %v934 = vadd.f32 %v196, %v933
  %v935 = vpop.f32.mrf.mxu0
  %v936 = vadd.f32 %v196, %v935
  %937 = vmatmul.bf16.gmra.mxu0 %v660
  %v938 = vpop.f32.mrf.mxu0
  %v939 = vadd.f32 %v196, %v938
  %v940 = vpop.f32.mrf.mxu0
  %v941 = vadd.f32 %v196, %v940
  %942 = vmatmul.bf16.gmra.mxu0 %v663
  %v943 = vpop.f32.mrf.mxu0
  %v944 = vadd.f32 %v196, %v943
  %v945 = vpop.f32.mrf.mxu0
  %v946 = vadd.f32 %v196, %v945
  %947 = vmatmul.bf16.gmra.mxu0 %v666
  %v948 = vpop.f32.mrf.mxu0
  %v949 = vadd.f32 %v196, %v948
  %v950 = vpop.f32.mrf.mxu0
  %v951 = vadd.f32 %v196, %v950
  %952 = vmatmul.bf16.gmra.mxu0 %v669
  %v953 = vpop.f32.mrf.mxu0
  %v954 = vadd.f32 %v196, %v953
  %v955 = vpop.f32.mrf.mxu0
  %v956 = vadd.f32 %v196, %v955
  %957 = vmatmul.bf16.gmra.mxu0 %v672
  %v958 = vpop.f32.mrf.mxu0
  %v959 = vadd.f32 %v196, %v958
  %v960 = vpop.f32.mrf.mxu0
  %v961 = vadd.f32 %v196, %v960
  %962 = vmatmul.bf16.gmra.mxu0 %v675
  %v963 = vpop.f32.mrf.mxu0
  %v964 = vadd.f32 %v196, %v963
  %v965 = vpop.f32.mrf.mxu0
  %v966 = vadd.f32 %v196, %v965
  %967 = vmatmul.bf16.gmra.mxu0 %v678
  %v968 = vpop.f32.mrf.mxu0
  %v969 = vadd.f32 %v196, %v968
  %v970 = vpop.f32.mrf.mxu0
  %v971 = vadd.f32 %v196, %v970
  %972 = vmatmul.bf16.gmra.mxu0 %v681
  %v973 = vpop.f32.mrf.mxu0
  %v974 = vadd.f32 %v196, %v973
  %v975 = vpop.f32.mrf.mxu0
  %v976 = vadd.f32 %v196, %v975
  %977 = vmatmul.bf16.gmra.mxu0 %v684
  %v978 = vpop.f32.mrf.mxu0
  %v979 = vadd.f32 %v196, %v978
  %v980 = vpop.f32.mrf.mxu0
  %v981 = vadd.f32 %v196, %v980
  %982 = vmatmul.bf16.gmra.mxu0 %v687
  %v983 = vpop.f32.mrf.mxu0
  %v984 = vadd.f32 %v196, %v983
  %v985 = vpop.f32.mrf.mxu0
  %v986 = vadd.f32 %v196, %v985
  %987 = vmatmul.bf16.gmra.mxu0 %v690
  %v988 = vpop.f32.mrf.mxu0
  %v989 = vadd.f32 %v196, %v988
  %v990 = vpop.f32.mrf.mxu0
  %v991 = vadd.f32 %v196, %v990
  %992 = vmatmul.bf16.gmra.mxu0 %v693
  %v993 = vpop.f32.mrf.mxu0
  %v994 = vadd.f32 %v196, %v993
  %v995 = vpop.f32.mrf.mxu0
  %v996 = vadd.f32 %v196, %v995
  %997 = vmatmul.bf16.gmra.mxu0 %v696
  %v998 = vpop.f32.mrf.mxu0
  %v999 = vadd.f32 %v196, %v998
  %v1000 = vpop.f32.mrf.mxu0
  %v1001 = vadd.f32 %v196, %v1000
  %1002 = vmatmul.bf16.gmra.mxu0 %v699
  %v1003 = vpop.f32.mrf.mxu0
  %v1004 = vadd.f32 %v196, %v1003
  %v1005 = vpop.f32.mrf.mxu0
  %v1006 = vadd.f32 %v196, %v1005
  %1007 = vmatmul.bf16.gmra.mxu0 %v702
  %v1008 = vpop.f32.mrf.mxu0
  %v1009 = vadd.f32 %v196, %v1008
  %v1010 = vpop.f32.mrf.mxu0
  %v1011 = vadd.f32 %v196, %v1010
  %1012 = vmatmul.bf16.gmra.mxu0 %v705
  %v1013 = vpop.f32.mrf.mxu0
  %v1014 = vadd.f32 %v196, %v1013
  %v1015 = vpop.f32.mrf.mxu0
  %v1016 = vadd.f32 %v196, %v1015
  %1017 = vmatmul.bf16.gmra.mxu0 %v708
  %v1018 = vpop.f32.mrf.mxu0
  %v1019 = vadd.f32 %v196, %v1018
  %v1020 = vpop.f32.mrf.mxu0
  %v1021 = vadd.f32 %v196, %v1020
  %1022 = vmatmul.bf16.gmra.mxu0 %v711
  %v1023 = vpop.f32.mrf.mxu0
  %v1024 = vadd.f32 %v196, %v1023
  %v1025 = vpop.f32.mrf.mxu0
  %v1026 = vadd.f32 %v196, %v1025
  %1027 = vmatmul.bf16.gmra.mxu0 %v714
  %v1028 = vpop.f32.mrf.mxu0
  %v1029 = vadd.f32 %v196, %v1028
  %v1030 = vpop.f32.mrf.mxu0
  %v1031 = vadd.f32 %v196, %v1030
  %1032 = vmatmul.bf16.gmra.mxu0 %v717
  %v1033 = vpop.f32.mrf.mxu0
  %v1034 = vadd.f32 %v196, %v1033
  %v1035 = vpop.f32.mrf.mxu0
  %v1036 = vadd.f32 %v196, %v1035
  %1037 = vmatmul.bf16.gmra.mxu0 %v720
  %v1038 = vpop.f32.mrf.mxu0
  %v1039 = vadd.f32 %v196, %v1038
  %v1040 = vpop.f32.mrf.mxu0
  %v1041 = vadd.f32 %v196, %v1040
  %1042 = vmatmul.bf16.gmra.mxu0 %v723
  %v1043 = vpop.f32.mrf.mxu0
  %v1044 = vadd.f32 %v196, %v1043
  %v1045 = vpop.f32.mrf.mxu0
  %v1046 = vadd.f32 %v196, %v1045
  %1047 = vmatmul.bf16.gmra.mxu0 %v726
  %v1048 = vpop.f32.mrf.mxu0
  %v1049 = vadd.f32 %v196, %v1048
  %v1050 = vpop.f32.mrf.mxu0
  %v1051 = vadd.f32 %v196, %v1050
  %1052 = vmatmul.bf16.gmra.mxu0 %v729
  %v1053 = vpop.f32.mrf.mxu0
  %v1054 = vadd.f32 %v196, %v1053
  %v1055 = vpop.f32.mrf.mxu0
  %v1056 = vadd.f32 %v196, %v1055
  %1057 = vmatmul.bf16.gmra.mxu0 %v732
  %v1058 = vpop.f32.mrf.mxu0
  %v1059 = vadd.f32 %v196, %v1058
  %v1060 = vpop.f32.mrf.mxu0
  %v1061 = vadd.f32 %v196, %v1060
  %1062 = vmatmul.bf16.gmra.mxu0 %v735
  %v1063 = vpop.f32.mrf.mxu0
  %v1064 = vadd.f32 %v196, %v1063
  %v1065 = vpop.f32.mrf.mxu0
  %v1066 = vadd.f32 %v196, %v1065
  %1067 = vmatmul.bf16.gmra.mxu0 %v738
  %v1068 = vpop.f32.mrf.mxu0
  %v1069 = vadd.f32 %v196, %v1068
  %v1070 = vpop.f32.mrf.mxu0
  %v1071 = vadd.f32 %v196, %v1070
  %1072 = vmatmul.bf16.gmra.mxu0 %v741
  %v1073 = vpop.f32.mrf.mxu0
  %v1074 = vadd.f32 %v196, %v1073
  %v1075 = vpop.f32.mrf.mxu0
  %v1076 = vadd.f32 %v196, %v1075
  %1077 = vmatmul.bf16.gmra.mxu0 %v744
  %v1078 = vpop.f32.mrf.mxu0
  %v1079 = vadd.f32 %v196, %v1078
  %v1080 = vpop.f32.mrf.mxu0
  %v1081 = vadd.f32 %v196, %v1080
  %1082 = vmatmul.bf16.gmra.mxu0 %v747
  %v1083 = vpop.f32.mrf.mxu0
  %v1084 = vadd.f32 %v196, %v1083
  %v1085 = vpop.f32.mrf.mxu0
  %v1086 = vadd.f32 %v196, %v1085
  %1087 = vmatmul.bf16.gmra.mxu0 %v750
  %v1088 = vpop.f32.mrf.mxu0
  %v1089 = vadd.f32 %v196, %v1088
  %v1090 = vpop.f32.mrf.mxu0
  %v1091 = vadd.f32 %v196, %v1090
  %1092 = vmatmul.bf16.gmra.mxu0 %v753
  %v1093 = vpop.f32.mrf.mxu0
  %v1094 = vadd.f32 %v196, %v1093
  %v1095 = vpop.f32.mrf.mxu0
  %v1096 = vadd.f32 %v196, %v1095
  %1097 = vmatmul.bf16.gmra.mxu0 %v756
  %v1098 = vpop.f32.mrf.mxu0
  %v1099 = vadd.f32 %v196, %v1098
  %v1100 = vpop.f32.mrf.mxu0
  %v1101 = vadd.f32 %v196, %v1100
  %1102 = vmatmul.bf16.gmra.mxu0 %v759
  %v1103 = vpop.f32.mrf.mxu0
  %v1104 = vadd.f32 %v196, %v1103
  %v1105 = vpop.f32.mrf.mxu0
  %v1106 = vadd.f32 %v196, %v1105
  %1107 = vmatmul.bf16.gmra.mxu0 %v762
  %v1108 = vpop.f32.mrf.mxu0
  %v1109 = vadd.f32 %v196, %v1108
  %v1110 = vpop.f32.mrf.mxu0
  %v1111 = vadd.f32 %v196, %v1110
  %1112 = vmatmul.bf16.gmra.mxu0 %v765
  %v1113 = vpop.f32.mrf.mxu0
  %v1114 = vadd.f32 %v196, %v1113
  %v1115 = vpop.f32.mrf.mxu0
  %v1116 = vadd.f32 %v196, %v1115
  %1117 = vmatmul.bf16.gmra.mxu0 %v768
  %v1118 = vpop.f32.mrf.mxu0
  %v1119 = vadd.f32 %v196, %v1118
  %v1120 = vpop.f32.mrf.mxu0
  %v1121 = vadd.f32 %v196, %v1120
  %1122 = vmatmul.bf16.gmra.mxu0 %v771
  %v1123 = vpop.f32.mrf.mxu0
  %v1124 = vadd.f32 %v196, %v1123
  %v1125 = vpop.f32.mrf.mxu0
  %v1126 = vadd.f32 %v196, %v1125
  %1127 = vmatmul.bf16.gmra.mxu0 %v774
  %v1128 = vpop.f32.mrf.mxu0
  %v1129 = vadd.f32 %v196, %v1128
  %v1130 = vpop.f32.mrf.mxu0
  %v1131 = vadd.f32 %v196, %v1130
  %1132 = vmatmul.bf16.gmra.mxu0 %v777
  %v1133 = vpop.f32.mrf.mxu0
  %v1134 = vadd.f32 %v196, %v1133
  %v1135 = vpop.f32.mrf.mxu0
  %v1136 = vadd.f32 %v196, %v1135
  %1137 = vmatmul.bf16.gmra.mxu0 %v780
  %v1138 = vpop.f32.mrf.mxu0
  %v1139 = vadd.f32 %v196, %v1138
  %v1140 = vpop.f32.mrf.mxu0
  %v1141 = vadd.f32 %v196, %v1140
  %1142 = vmatmul.bf16.gmra.mxu0 %v783
  %v1143 = vpop.f32.mrf.mxu0
  %v1144 = vadd.f32 %v196, %v1143
  %v1145 = vpop.f32.mrf.mxu0
  %v1146 = vadd.f32 %v196, %v1145
  %1147 = vmatmul.bf16.gmra.mxu0 %v786
  %v1148 = vpop.f32.mrf.mxu0
  %v1149 = vadd.f32 %v196, %v1148
  %v1150 = vpop.f32.mrf.mxu0
  %v1151 = vadd.f32 %v196, %v1150
  %1152 = vmatmul.bf16.gmra.mxu0 %v789
  %v1153 = vpop.f32.mrf.mxu0
  %v1154 = vadd.f32 %v196, %v1153
  %v1155 = vpop.f32.mrf.mxu0
  %v1156 = vadd.f32 %v196, %v1155
  %1157 = vmatmul.bf16.gmra.mxu0 %v792
  %v1158 = vpop.f32.mrf.mxu0
  %v1159 = vadd.f32 %v196, %v1158
  %v1160 = vpop.f32.mrf.mxu0
  %v1161 = vadd.f32 %v196, %v1160
  %1162 = vmatmul.bf16.gmra.mxu0 %v795
  %v1163 = vpop.f32.mrf.mxu0
  %v1164 = vadd.f32 %v196, %v1163
  %v1165 = vpop.f32.mrf.mxu0
  %v1166 = vadd.f32 %v196, %v1165
  %1167 = vmatmul.bf16.gmra.mxu0 %v798
  %v1168 = vpop.f32.mrf.mxu0
  %v1169 = vadd.f32 %v196, %v1168
  %v1170 = vpop.f32.mrf.mxu0
  %v1171 = vadd.f32 %v196, %v1170
  %1172 = vmatmul.bf16.gmra.mxu0 %v801
  %v1173 = vpop.f32.mrf.mxu0
  %v1174 = vadd.f32 %v196, %v1173
  %v1175 = vpop.f32.mrf.mxu0
  %v1176 = vadd.f32 %v196, %v1175
  %1177 = vmatmul.bf16.gmra.mxu0 %v804
  %v1178 = vpop.f32.mrf.mxu0
  %v1179 = vadd.f32 %v196, %v1178
  %v1180 = vpop.f32.mrf.mxu0
  %v1181 = vadd.f32 %v196, %v1180
  %1182 = vmatmul.bf16.gmra.mxu0 %v807
  %v1183 = vpop.f32.mrf.mxu0
  %v1184 = vadd.f32 %v196, %v1183
  %v1185 = vpop.f32.mrf.mxu0
  %v1186 = vadd.f32 %v196, %v1185
  %1187 = vmatmul.bf16.gmra.mxu0 %v810
  %v1188 = vpop.f32.mrf.mxu0
  %v1189 = vadd.f32 %v196, %v1188
  %v1190 = vpop.f32.mrf.mxu0
  %v1191 = vadd.f32 %v196, %v1190
  %1192 = vmatmul.bf16.gmra.mxu0 %v813
  %v1193 = vpop.f32.mrf.mxu0
  %v1194 = vadd.f32 %v196, %v1193
  %v1195 = vpop.f32.mrf.mxu0
  %v1196 = vadd.f32 %v196, %v1195
  %1197 = vmatmul.bf16.gmra.mxu0 %v816
  %v1198 = vpop.f32.mrf.mxu0
  %v1199 = vadd.f32 %v196, %v1198
  %v1200 = vpop.f32.mrf.mxu0
  %v1201 = vadd.f32 %v196, %v1200
  %1202 = vmatmul.bf16.gmra.mxu0 %v819
  %v1203 = vpop.f32.mrf.mxu0
  %v1204 = vadd.f32 %v196, %v1203
  %v1205 = vpop.f32.mrf.mxu0
  %v1206 = vadd.f32 %v196, %v1205
  %1207 = vmatmul.bf16.gmra.mxu0 %v822
  %v1208 = vpop.f32.mrf.mxu0
  %v1209 = vadd.f32 %v196, %v1208
  %v1210 = vpop.f32.mrf.mxu0
  %v1211 = vadd.f32 %v196, %v1210
  %1212 = vmatmul.bf16.gmra.mxu0 %v825
  %v1213 = vpop.f32.mrf.mxu0
  %v1214 = vadd.f32 %v196, %v1213
  %v1215 = vpop.f32.mrf.mxu0
  %v1216 = vadd.f32 %v196, %v1215
  %1217 = vmatmul.bf16.gmra.mxu0 %v828
  %v1218 = vpop.f32.mrf.mxu0
  %v1219 = vadd.f32 %v196, %v1218
  %v1220 = vpop.f32.mrf.mxu0
  %v1221 = vadd.f32 %v196, %v1220
  %1222 = vmatmul.bf16.gmra.mxu0 %v831
  %v1223 = vpop.f32.mrf.mxu0
  %v1224 = vadd.f32 %v196, %v1223
  %v1225 = vpop.f32.mrf.mxu0
  %v1226 = vadd.f32 %v196, %v1225
  %1227 = vmatmul.bf16.gmra.mxu0 %v834
  %v1228 = vpop.f32.mrf.mxu0
  %v1229 = vadd.f32 %v196, %v1228
  %v1230 = vpop.f32.mrf.mxu0
  %v1231 = vadd.f32 %v196, %v1230
  %1232 = vmatmul.bf16.gmra.mxu0 %v837
  %v1233 = vpop.f32.mrf.mxu0
  %v1234 = vadd.f32 %v196, %v1233
  %v1235 = vpop.f32.mrf.mxu0
  %v1236 = vadd.f32 %v196, %v1235
  %1237 = vmatmul.bf16.gmra.mxu0 %v840
  %v1238 = vpop.f32.mrf.mxu0
  %v1239 = vadd.f32 %v196, %v1238
  %v1240 = vpop.f32.mrf.mxu0
  %v1241 = vadd.f32 %v196, %v1240
  %1242 = vmatmul.bf16.gmra.mxu0 %v843
  %v1243 = vpop.f32.mrf.mxu0
  %v1244 = vadd.f32 %v196, %v1243
  %v1245 = vpop.f32.mrf.mxu0
  %v1246 = vadd.f32 %v196, %v1245
  %1247 = vmatmul.bf16.gmra.mxu0 %v846
  %v1248 = vpop.f32.mrf.mxu0
  %v1249 = vadd.f32 %v196, %v1248
  %v1250 = vpop.f32.mrf.mxu0
  %v1251 = vadd.f32 %v196, %v1250
  %1252 = vmatmul.bf16.gmra.mxu0 %v849
  %v1253 = vpop.f32.mrf.mxu0
  %v1254 = vadd.f32 %v196, %v1253
  %v1255 = vpop.f32.mrf.mxu0
  %v1256 = vadd.f32 %v196, %v1255
  %1257 = vmatmul.bf16.gmra.mxu0 %v852
  %v1258 = vpop.f32.mrf.mxu0
  %v1259 = vadd.f32 %v196, %v1258
  %v1260 = vpop.f32.mrf.mxu0
  %v1261 = vadd.f32 %v196, %v1260
  %1262 = vmatmul.bf16.gmra.mxu0 %v855
  %v1263 = vpop.f32.mrf.mxu0
  %v1264 = vadd.f32 %v196, %v1263
  %v1265 = vpop.f32.mrf.mxu0
  %v1266 = vadd.f32 %v196, %v1265
  %1267 = vmatmul.bf16.gmra.mxu0 %v858
  %v1268 = vpop.f32.mrf.mxu0
  %v1269 = vadd.f32 %v196, %v1268
  %v1270 = vpop.f32.mrf.mxu0
  %v1271 = vadd.f32 %v196, %v1270
  %1272 = vmatmul.bf16.gmra.mxu0 %v861
  %v1273 = vpop.f32.mrf.mxu0
  %v1274 = vadd.f32 %v196, %v1273
  %v1275 = vpop.f32.mrf.mxu0
  %v1276 = vadd.f32 %v196, %v1275
  %1277 = vmatmul.bf16.gmra.mxu0 %v864
  %v1278 = vpop.f32.mrf.mxu0
  %v1279 = vadd.f32 %v196, %v1278
  %v1280 = vpop.f32.mrf.mxu0
  %v1281 = vadd.f32 %v196, %v1280
  %1282 = vmatmul.bf16.gmra.mxu0 %v867
  %v1283 = vpop.f32.mrf.mxu0
  %v1284 = vadd.f32 %v196, %v1283
  %v1285 = vpop.f32.mrf.mxu0
  %v1286 = vadd.f32 %v196, %v1285
  %1287 = vmatmul.bf16.gmra.mxu0 %v870
  %v1288 = vpop.f32.mrf.mxu0
  %v1289 = vadd.f32 %v196, %v1288
  %v1290 = vpop.f32.mrf.mxu0
  %v1291 = vadd.f32 %v196, %v1290
  %1292 = vmatmul.bf16.gmra.mxu0 %v873
  %v1293 = vpop.f32.mrf.mxu0
  %v1294 = vadd.f32 %v196, %v1293
  %v1295 = vpop.f32.mrf.mxu0
  %v1296 = vadd.f32 %v196, %v1295
  %1297 = vmatmul.bf16.gmra.mxu0 %v876
  %v1298 = vpop.f32.mrf.mxu0
  %v1299 = vadd.f32 %v196, %v1298
  %v1300 = vpop.f32.mrf.mxu0
  %v1301 = vadd.f32 %v196, %v1300
  %1302 = vmatmul.bf16.gmra.mxu0 %v879
  %v1303 = vpop.f32.mrf.mxu0
  %v1304 = vadd.f32 %v196, %v1303
  %v1305 = vpop.f32.mrf.mxu0
  %v1306 = vadd.f32 %v196, %v1305
  %1307 = vmatmul.bf16.gmra.mxu0 %v882
  %v1308 = vpop.f32.mrf.mxu0
  %v1309 = vadd.f32 %v196, %v1308
  %v1310 = vpop.f32.mrf.mxu0
  %v1311 = vadd.f32 %v196, %v1310
  %1312 = vmatmul.bf16.gmra.mxu0 %v885
  %v1313 = vpop.f32.mrf.mxu0
  %v1314 = vadd.f32 %v196, %v1313
  %v1315 = vpop.f32.mrf.mxu0
  %v1316 = vadd.f32 %v196, %v1315
  %1317 = vmatmul.bf16.gmra.mxu0 %v888
  %v1318 = vpop.f32.mrf.mxu0
  %v1319 = vadd.f32 %v196, %v1318
  %v1320 = vpop.f32.mrf.mxu0
  %v1321 = vadd.f32 %v196, %v1320
  %1322 = vmatmul.bf16.gmra.mxu0 %v891
  %v1323 = vpop.f32.mrf.mxu0
  %v1324 = vadd.f32 %v196, %v1323
  %v1325 = vpop.f32.mrf.mxu0
  %v1326 = vadd.f32 %v196, %v1325
  %1327 = vmatmul.bf16.gmra.mxu0 %v894
  %v1328 = vpop.f32.mrf.mxu0
  %v1329 = vadd.f32 %v196, %v1328
  %v1330 = vpop.f32.mrf.mxu0
  %v1331 = vadd.f32 %v196, %v1330
  %1332 = vmatmul.bf16.gmra.mxu0 %v897
  %v1333 = vpop.f32.mrf.mxu0
  %v1334 = vadd.f32 %v196, %v1333
  %v1335 = vpop.f32.mrf.mxu0
  %v1336 = vadd.f32 %v196, %v1335
  %1337 = vmatmul.bf16.gmra.mxu0 %v900
  %v1338 = vpop.f32.mrf.mxu0
  %v1339 = vadd.f32 %v196, %v1338
  %v1340 = vpop.f32.mrf.mxu0
  %v1341 = vadd.f32 %v196, %v1340
  %1342 = vmatmul.bf16.gmra.mxu0 %v903
  %v1343 = vpop.f32.mrf.mxu0
  %v1344 = vadd.f32 %v196, %v1343
  %v1345 = vpop.f32.mrf.mxu0
  %v1346 = vadd.f32 %v196, %v1345
  %1347 = vmatmul.bf16.gmra.mxu0 %v906
  %v1348 = vpop.f32.mrf.mxu0
  %v1349 = vadd.f32 %v196, %v1348
  %v1350 = vpop.f32.mrf.mxu0
  %v1351 = vadd.f32 %v196, %v1350
  %1352 = vdwg.mxu0
  %vm1353 = vcmp.gt.f32.partialorder %v924, 0.0
  %vm1354 = vcmp.gt.f32.partialorder %v926, 0.0
  %vm1355 = vcmp.gt.f32.partialorder %v929, 0.0
  %vm1356 = vcmp.gt.f32.partialorder %v931, 0.0
  %vm1357 = vcmp.gt.f32.partialorder %v934, 0.0
  %vm1358 = vcmp.gt.f32.partialorder %v936, 0.0
  %vm1359 = vcmp.gt.f32.partialorder %v939, 0.0
  %vm1360 = vcmp.gt.f32.partialorder %v941, 0.0
  %vm1361 = vcmp.gt.f32.partialorder %v944, 0.0
  %vm1362 = vcmp.gt.f32.partialorder %v946, 0.0
  %vm1363 = vcmp.gt.f32.partialorder %v949, 0.0
  %vm1364 = vcmp.gt.f32.partialorder %v951, 0.0
  %vm1365 = vcmp.gt.f32.partialorder %v954, 0.0
  %vm1366 = vcmp.gt.f32.partialorder %v956, 0.0
  %vm1367 = vcmp.gt.f32.partialorder %v959, 0.0
  %vm1368 = vcmp.gt.f32.partialorder %v961, 0.0
  %vm1369 = vcmp.gt.f32.partialorder %v964, 0.0
  %vm1370 = vcmp.gt.f32.partialorder %v966, 0.0
  %vm1371 = vcmp.gt.f32.partialorder %v969, 0.0
  %vm1372 = vcmp.gt.f32.partialorder %v971, 0.0
  %vm1373 = vcmp.gt.f32.partialorder %v974, 0.0
  %vm1374 = vcmp.gt.f32.partialorder %v976, 0.0
  %vm1375 = vcmp.gt.f32.partialorder %v979, 0.0
  %vm1376 = vcmp.gt.f32.partialorder %v981, 0.0
  %vm1377 = vcmp.gt.f32.partialorder %v984, 0.0
  %vm1378 = vcmp.gt.f32.partialorder %v986, 0.0
  %vm1379 = vcmp.gt.f32.partialorder %v989, 0.0
  %vm1380 = vcmp.gt.f32.partialorder %v991, 0.0
  %vm1381 = vcmp.gt.f32.partialorder %v994, 0.0
  %vm1382 = vcmp.gt.f32.partialorder %v996, 0.0
  %vm1383 = vcmp.gt.f32.partialorder %v999, 0.0
  %vm1384 = vcmp.gt.f32.partialorder %v1001, 0.0
  %vm1385 = vcmp.gt.f32.partialorder %v1004, 0.0
  %vm1386 = vcmp.gt.f32.partialorder %v1006, 0.0
  %vm1387 = vcmp.gt.f32.partialorder %v1009, 0.0
  %vm1388 = vcmp.gt.f32.partialorder %v1011, 0.0
  %vm1389 = vcmp.gt.f32.partialorder %v1014, 0.0
  %vm1390 = vcmp.gt.f32.partialorder %v1016, 0.0
  %vm1391 = vcmp.gt.f32.partialorder %v1019, 0.0
  %vm1392 = vcmp.gt.f32.partialorder %v1021, 0.0
  %vm1393 = vcmp.gt.f32.partialorder %v1024, 0.0
  %vm1394 = vcmp.gt.f32.partialorder %v1026, 0.0
  %vm1395 = vcmp.gt.f32.partialorder %v1029, 0.0
  %vm1396 = vcmp.gt.f32.partialorder %v1031, 0.0
  %vm1397 = vcmp.gt.f32.partialorder %v1034, 0.0
  %vm1398 = vcmp.gt.f32.partialorder %v1036, 0.0
  %vm1399 = vcmp.gt.f32.partialorder %v1039, 0.0
  %vm1400 = vcmp.gt.f32.partialorder %v1041, 0.0
  %vm1401 = vcmp.gt.f32.partialorder %v1044, 0.0
  %vm1402 = vcmp.gt.f32.partialorder %v1046, 0.0
  %vm1403 = vcmp.gt.f32.partialorder %v1049, 0.0
  %vm1404 = vcmp.gt.f32.partialorder %v1051, 0.0
  %vm1405 = vcmp.gt.f32.partialorder %v1054, 0.0
  %vm1406 = vcmp.gt.f32.partialorder %v1056, 0.0
  %vm1407 = vcmp.gt.f32.partialorder %v1059, 0.0
  %vm1408 = vcmp.gt.f32.partialorder %v1061, 0.0
  %vm1409 = vcmp.gt.f32.partialorder %v1064, 0.0
  %vm1410 = vcmp.gt.f32.partialorder %v1066, 0.0
  %vm1411 = vcmp.gt.f32.partialorder %v1069, 0.0
  %vm1412 = vcmp.gt.f32.partialorder %v1071, 0.0
  %vm1413 = vcmp.gt.f32.partialorder %v1074, 0.0
  %vm1414 = vcmp.gt.f32.partialorder %v1076, 0.0
  %vm1415 = vcmp.gt.f32.partialorder %v1079, 0.0
  %vm1416 = vcmp.gt.f32.partialorder %v1081, 0.0
  %vm1417 = vcmp.gt.f32.partialorder %v1084, 0.0
  %vm1418 = vcmp.gt.f32.partialorder %v1086, 0.0
  %vm1419 = vcmp.gt.f32.partialorder %v1089, 0.0
  %vm1420 = vcmp.gt.f32.partialorder %v1091, 0.0
  %vm1421 = vcmp.gt.f32.partialorder %v1094, 0.0
  %vm1422 = vcmp.gt.f32.partialorder %v1096, 0.0
  %vm1423 = vcmp.gt.f32.partialorder %v1099, 0.0
  %vm1424 = vcmp.gt.f32.partialorder %v1101, 0.0
  %vm1425 = vcmp.gt.f32.partialorder %v1104, 0.0
  %vm1426 = vcmp.gt.f32.partialorder %v1106, 0.0
  %vm1427 = vcmp.gt.f32.partialorder %v1109, 0.0
  %vm1428 = vcmp.gt.f32.partialorder %v1111, 0.0
  %vm1429 = vcmp.gt.f32.partialorder %v1114, 0.0
  %vm1430 = vcmp.gt.f32.partialorder %v1116, 0.0
  %vm1431 = vcmp.gt.f32.partialorder %v1119, 0.0
  %vm1432 = vcmp.gt.f32.partialorder %v1121, 0.0
  %vm1433 = vcmp.gt.f32.partialorder %v1124, 0.0
  %vm1434 = vcmp.gt.f32.partialorder %v1126, 0.0
  %vm1435 = vcmp.gt.f32.partialorder %v1129, 0.0
  %vm1436 = vcmp.gt.f32.partialorder %v1131, 0.0
  %vm1437 = vcmp.gt.f32.partialorder %v1134, 0.0
  %vm1438 = vcmp.gt.f32.partialorder %v1136, 0.0
  %vm1439 = vcmp.gt.f32.partialorder %v1139, 0.0
  %vm1440 = vcmp.gt.f32.partialorder %v1141, 0.0
  %vm1441 = vcmp.gt.f32.partialorder %v1144, 0.0
  %vm1442 = vcmp.gt.f32.partialorder %v1146, 0.0
  %vm1443 = vcmp.gt.f32.partialorder %v1149, 0.0
  %vm1444 = vcmp.gt.f32.partialorder %v1151, 0.0
  %vm1445 = vcmp.gt.f32.partialorder %v1154, 0.0
  %vm1446 = vcmp.gt.f32.partialorder %v1156, 0.0
  %vm1447 = vcmp.gt.f32.partialorder %v1159, 0.0
  %vm1448 = vcmp.gt.f32.partialorder %v1161, 0.0
  %vm1449 = vcmp.gt.f32.partialorder %v1164, 0.0
  %vm1450 = vcmp.gt.f32.partialorder %v1166, 0.0
  %vm1451 = vcmp.gt.f32.partialorder %v1169, 0.0
  %vm1452 = vcmp.gt.f32.partialorder %v1171, 0.0
  %vm1453 = vcmp.gt.f32.partialorder %v1174, 0.0
  %vm1454 = vcmp.gt.f32.partialorder %v1176, 0.0
  %vm1455 = vcmp.gt.f32.partialorder %v1179, 0.0
  %vm1456 = vcmp.gt.f32.partialorder %v1181, 0.0
  %vm1457 = vcmp.gt.f32.partialorder %v1184, 0.0
  %vm1458 = vcmp.gt.f32.partialorder %v1186, 0.0
  %vm1459 = vcmp.gt.f32.partialorder %v1189, 0.0
  %vm1460 = vcmp.gt.f32.partialorder %v1191, 0.0
  %vm1461 = vcmp.gt.f32.partialorder %v1194, 0.0
  %vm1462 = vcmp.gt.f32.partialorder %v1196, 0.0
  %vm1463 = vcmp.gt.f32.partialorder %v1199, 0.0
  %vm1464 = vcmp.gt.f32.partialorder %v1201, 0.0
  %vm1465 = vcmp.gt.f32.partialorder %v1204, 0.0
  %vm1466 = vcmp.gt.f32.partialorder %v1206, 0.0
  %vm1467 = vcmp.gt.f32.partialorder %v1209, 0.0
  %vm1468 = vcmp.gt.f32.partialorder %v1211, 0.0
  %vm1469 = vcmp.gt.f32.partialorder %v1214, 0.0
  %vm1470 = vcmp.gt.f32.partialorder %v1216, 0.0
  %vm1471 = vcmp.gt.f32.partialorder %v1219, 0.0
  %vm1472 = vcmp.gt.f32.partialorder %v1221, 0.0
  %vm1473 = vcmp.gt.f32.partialorder %v1224, 0.0
  %vm1474 = vcmp.gt.f32.partialorder %v1226, 0.0
  %vm1475 = vcmp.gt.f32.partialorder %v1229, 0.0
  %vm1476 = vcmp.gt.f32.partialorder %v1231, 0.0
  %vm1477 = vcmp.gt.f32.partialorder %v1234, 0.0
  %vm1478 = vcmp.gt.f32.partialorder %v1236, 0.0
  %vm1479 = vcmp.gt.f32.partialorder %v1239, 0.0
  %vm1480 = vcmp.gt.f32.partialorder %v1241, 0.0
  %vm1481 = vcmp.gt.f32.partialorder %v1244, 0.0
  %vm1482 = vcmp.gt.f32.partialorder %v1246, 0.0
  %vm1483 = vcmp.gt.f32.partialorder %v1249, 0.0
  %vm1484 = vcmp.gt.f32.partialorder %v1251, 0.0
  %vm1485 = vcmp.gt.f32.partialorder %v1254, 0.0
  %vm1486 = vcmp.gt.f32.partialorder %v1256, 0.0
  %vm1487 = vcmp.gt.f32.partialorder %v1259, 0.0
  %vm1488 = vcmp.gt.f32.partialorder %v1261, 0.0
  %vm1489 = vcmp.gt.f32.partialorder %v1264, 0.0
  %vm1490 = vcmp.gt.f32.partialorder %v1266, 0.0
  %vm1491 = vcmp.gt.f32.partialorder %v1269, 0.0
  %vm1492 = vcmp.gt.f32.partialorder %v1271, 0.0
  %vm1493 = vcmp.gt.f32.partialorder %v1274, 0.0
  %vm1494 = vcmp.gt.f32.partialorder %v1276, 0.0
  %vm1495 = vcmp.gt.f32.partialorder %v1279, 0.0
  %vm1496 = vcmp.gt.f32.partialorder %v1281, 0.0
  %vm1497 = vcmp.gt.f32.partialorder %v1284, 0.0
  %vm1498 = vcmp.gt.f32.partialorder %v1286, 0.0
  %vm1499 = vcmp.gt.f32.partialorder %v1289, 0.0
  %vm1500 = vcmp.gt.f32.partialorder %v1291, 0.0
  %vm1501 = vcmp.gt.f32.partialorder %v1294, 0.0
  %vm1502 = vcmp.gt.f32.partialorder %v1296, 0.0
  %vm1503 = vcmp.gt.f32.partialorder %v1299, 0.0
  %vm1504 = vcmp.gt.f32.partialorder %v1301, 0.0
  %vm1505 = vcmp.gt.f32.partialorder %v1304, 0.0
  %vm1506 = vcmp.gt.f32.partialorder %v1306, 0.0
  %vm1507 = vcmp.gt.f32.partialorder %v1309, 0.0
  %vm1508 = vcmp.gt.f32.partialorder %v1311, 0.0
  %vm1509 = vcmp.gt.f32.partialorder %v1314, 0.0
  %vm1510 = vcmp.gt.f32.partialorder %v1316, 0.0
  %vm1511 = vcmp.gt.f32.partialorder %v1319, 0.0
  %vm1512 = vcmp.gt.f32.partialorder %v1321, 0.0
  %vm1513 = vcmp.gt.f32.partialorder %v1324, 0.0
  %vm1514 = vcmp.gt.f32.partialorder %v1326, 0.0
  %vm1515 = vcmp.gt.f32.partialorder %v1329, 0.0
  %vm1516 = vcmp.gt.f32.partialorder %v1331, 0.0
  %vm1517 = vcmp.gt.f32.partialorder %v1334, 0.0
  %vm1518 = vcmp.gt.f32.partialorder %v1336, 0.0
  %vm1519 = vcmp.gt.f32.partialorder %v1339, 0.0
  %vm1520 = vcmp.gt.f32.partialorder %v1341, 0.0
  %vm1521 = vcmp.gt.f32.partialorder %v1344, 0.0
  %vm1522 = vcmp.gt.f32.partialorder %v1346, 0.0
  %vm1523 = vcmp.gt.f32.partialorder %v1349, 0.0
  %vm1524 = vcmp.gt.f32.partialorder %v1351, 0.0
  %v1525 = vmul.f32 %v924, 0.2
  %v1526 = vmul.f32 %v926, 0.2
  %v1527 = vmul.f32 %v929, 0.2
  %v1528 = vmul.f32 %v931, 0.2
  %v1529 = vmul.f32 %v934, 0.2
  %v1530 = vmul.f32 %v936, 0.2
  %v1531 = vmul.f32 %v939, 0.2
  %v1532 = vmul.f32 %v941, 0.2
  %v1533 = vmul.f32 %v944, 0.2
  %v1534 = vmul.f32 %v946, 0.2
  %v1535 = vmul.f32 %v949, 0.2
  %v1536 = vmul.f32 %v951, 0.2
  %v1537 = vmul.f32 %v954, 0.2
  %v1538 = vmul.f32 %v956, 0.2
  %v1539 = vmul.f32 %v959, 0.2
  %v1540 = vmul.f32 %v961, 0.2
  %v1541 = vmul.f32 %v964, 0.2
  %v1542 = vmul.f32 %v966, 0.2
  %v1543 = vmul.f32 %v969, 0.2
  %v1544 = vmul.f32 %v971, 0.2
  %v1545 = vmul.f32 %v974, 0.2
  %v1546 = vmul.f32 %v976, 0.2
  %v1547 = vmul.f32 %v979, 0.2
  %v1548 = vmul.f32 %v981, 0.2
  %v1549 = vmul.f32 %v984, 0.2
  %v1550 = vmul.f32 %v986, 0.2
  %v1551 = vmul.f32 %v989, 0.2
  %v1552 = vmul.f32 %v991, 0.2
  %v1553 = vmul.f32 %v994, 0.2
  %v1554 = vmul.f32 %v996, 0.2
  %v1555 = vmul.f32 %v999, 0.2
  %v1556 = vmul.f32 %v1001, 0.2
  %v1557 = vmul.f32 %v1004, 0.2
  %v1558 = vmul.f32 %v1006, 0.2
  %v1559 = vmul.f32 %v1009, 0.2
  %v1560 = vmul.f32 %v1011, 0.2
  %v1561 = vmul.f32 %v1014, 0.2
  %v1562 = vmul.f32 %v1016, 0.2
  %v1563 = vmul.f32 %v1019, 0.2
  %v1564 = vmul.f32 %v1021, 0.2
  %v1565 = vmul.f32 %v1024, 0.2
  %v1566 = vmul.f32 %v1026, 0.2
  %v1567 = vmul.f32 %v1029, 0.2
  %v1568 = vmul.f32 %v1031, 0.2
  %v1569 = vmul.f32 %v1034, 0.2
  %v1570 = vmul.f32 %v1036, 0.2
  %v1571 = vmul.f32 %v1039, 0.2
  %v1572 = vmul.f32 %v1041, 0.2
  %v1573 = vmul.f32 %v1044, 0.2
  %v1574 = vmul.f32 %v1046, 0.2
  %v1575 = vmul.f32 %v1049, 0.2
  %v1576 = vmul.f32 %v1051, 0.2
  %v1577 = vmul.f32 %v1054, 0.2
  %v1578 = vmul.f32 %v1056, 0.2
  %v1579 = vmul.f32 %v1059, 0.2
  %v1580 = vmul.f32 %v1061, 0.2
  %v1581 = vmul.f32 %v1064, 0.2
  %v1582 = vmul.f32 %v1066, 0.2
  %v1583 = vmul.f32 %v1069, 0.2
  %v1584 = vmul.f32 %v1071, 0.2
  %v1585 = vmul.f32 %v1074, 0.2
  %v1586 = vmul.f32 %v1076, 0.2
  %v1587 = vmul.f32 %v1079, 0.2
  %v1588 = vmul.f32 %v1081, 0.2
  %v1589 = vmul.f32 %v1084, 0.2
  %v1590 = vmul.f32 %v1086, 0.2
  %v1591 = vmul.f32 %v1089, 0.2
  %v1592 = vmul.f32 %v1091, 0.2
  %v1593 = vmul.f32 %v1094, 0.2
  %v1594 = vmul.f32 %v1096, 0.2
  %v1595 = vmul.f32 %v1099, 0.2
  %v1596 = vmul.f32 %v1101, 0.2
  %v1597 = vmul.f32 %v1104, 0.2
  %v1598 = vmul.f32 %v1106, 0.2
  %v1599 = vmul.f32 %v1109, 0.2
  %v1600 = vmul.f32 %v1111, 0.2
  %v1601 = vmul.f32 %v1114, 0.2
  %v1602 = vmul.f32 %v1116, 0.2
  %v1603 = vmul.f32 %v1119, 0.2
  %v1604 = vmul.f32 %v1121, 0.2
  %v1605 = vmul.f32 %v1124, 0.2
  %v1606 = vmul.f32 %v1126, 0.2
  %v1607 = vmul.f32 %v1129, 0.2
  %v1608 = vmul.f32 %v1131, 0.2
  %v1609 = vmul.f32 %v1134, 0.2
  %v1610 = vmul.f32 %v1136, 0.2
  %v1611 = vmul.f32 %v1139, 0.2
  %v1612 = vmul.f32 %v1141, 0.2
  %v1613 = vmul.f32 %v1144, 0.2
  %v1614 = vmul.f32 %v1146, 0.2
  %v1615 = vmul.f32 %v1149, 0.2
  %v1616 = vmul.f32 %v1151, 0.2
  %v1617 = vmul.f32 %v1154, 0.2
  %v1618 = vmul.f32 %v1156, 0.2
  %v1619 = vmul.f32 %v1159, 0.2
  %v1620 = vmul.f32 %v1161, 0.2
  %v1621 = vmul.f32 %v1164, 0.2
  %v1622 = vmul.f32 %v1166, 0.2
  %v1623 = vmul.f32 %v1169, 0.2
  %v1624 = vmul.f32 %v1171, 0.2
  %v1625 = vmul.f32 %v1174, 0.2
  %v1626 = vmul.f32 %v1176, 0.2
  %v1627 = vmul.f32 %v1179, 0.2
  %v1628 = vmul.f32 %v1181, 0.2
  %v1629 = vmul.f32 %v1184, 0.2
  %v1630 = vmul.f32 %v1186, 0.2
  %v1631 = vmul.f32 %v1189, 0.2
  %v1632 = vmul.f32 %v1191, 0.2
  %v1633 = vmul.f32 %v1194, 0.2
  %v1634 = vmul.f32 %v1196, 0.2
  %v1635 = vmul.f32 %v1199, 0.2
  %v1636 = vmul.f32 %v1201, 0.2
  %v1637 = vmul.f32 %v1204, 0.2
  %v1638 = vmul.f32 %v1206, 0.2
  %v1639 = vmul.f32 %v1209, 0.2
  %v1640 = vmul.f32 %v1211, 0.2
  %v1641 = vmul.f32 %v1214, 0.2
  %v1642 = vmul.f32 %v1216, 0.2
  %v1643 = vmul.f32 %v1219, 0.2
  %v1644 = vmul.f32 %v1221, 0.2
  %v1645 = vmul.f32 %v1224, 0.2
  %v1646 = vmul.f32 %v1226, 0.2
  %v1647 = vmul.f32 %v1229, 0.2
  %v1648 = vmul.f32 %v1231, 0.2
  %v1649 = vmul.f32 %v1234, 0.2
  %v1650 = vmul.f32 %v1236, 0.2
  %v1651 = vmul.f32 %v1239, 0.2
  %v1652 = vmul.f32 %v1241, 0.2
  %v1653 = vmul.f32 %v1244, 0.2
  %v1654 = vmul.f32 %v1246, 0.2
  %v1655 = vmul.f32 %v1249, 0.2
  %v1656 = vmul.f32 %v1251, 0.2
  %v1657 = vmul.f32 %v1254, 0.2
  %v1658 = vmul.f32 %v1256, 0.2
  %v1659 = vmul.f32 %v1259, 0.2
  %v1660 = vmul.f32 %v1261, 0.2
  %v1661 = vmul.f32 %v1264, 0.2
  %v1662 = vmul.f32 %v1266, 0.2
  %v1663 = vmul.f32 %v1269, 0.2
  %v1664 = vmul.f32 %v1271, 0.2
  %v1665 = vmul.f32 %v1274, 0.2
  %v1666 = vmul.f32 %v1276, 0.2
  %v1667 = vmul.f32 %v1279, 0.2
  %v1668 = vmul.f32 %v1281, 0.2
  %v1669 = vmul.f32 %v1284, 0.2
  %v1670 = vmul.f32 %v1286, 0.2
  %v1671 = vmul.f32 %v1289, 0.2
  %v1672 = vmul.f32 %v1291, 0.2
  %v1673 = vmul.f32 %v1294, 0.2
  %v1674 = vmul.f32 %v1296, 0.2
  %v1675 = vmul.f32 %v1299, 0.2
  %v1676 = vmul.f32 %v1301, 0.2
  %v1677 = vmul.f32 %v1304, 0.2
  %v1678 = vmul.f32 %v1306, 0.2
  %v1679 = vmul.f32 %v1309, 0.2
  %v1680 = vmul.f32 %v1311, 0.2
  %v1681 = vmul.f32 %v1314, 0.2
  %v1682 = vmul.f32 %v1316, 0.2
  %v1683 = vmul.f32 %v1319, 0.2
  %v1684 = vmul.f32 %v1321, 0.2
  %v1685 = vmul.f32 %v1324, 0.2
  %v1686 = vmul.f32 %v1326, 0.2
  %v1687 = vmul.f32 %v1329, 0.2
  %v1688 = vmul.f32 %v1331, 0.2
  %v1689 = vmul.f32 %v1334, 0.2
  %v1690 = vmul.f32 %v1336, 0.2
  %v1691 = vmul.f32 %v1339, 0.2
  %v1692 = vmul.f32 %v1341, 0.2
  %v1693 = vmul.f32 %v1344, 0.2
  %v1694 = vmul.f32 %v1346, 0.2
  %v1695 = vmul.f32 %v1349, 0.2
  %v1696 = vmul.f32 %v1351, 0.2
  %v1697 = vsel %vm1353, %v924, %v1525
  %v1698 = vsel %vm1354, %v926, %v1526
  %v1699 = vsel %vm1355, %v929, %v1527
  %v1700 = vsel %vm1356, %v931, %v1528
  %v1701 = vsel %vm1357, %v934, %v1529
  %v1702 = vsel %vm1358, %v936, %v1530
  %v1703 = vsel %vm1359, %v939, %v1531
  %v1704 = vsel %vm1360, %v941, %v1532
  %v1705 = vsel %vm1361, %v944, %v1533
  %v1706 = vsel %vm1362, %v946, %v1534
  %v1707 = vsel %vm1363, %v949, %v1535
  %v1708 = vsel %vm1364, %v951, %v1536
  %v1709 = vsel %vm1365, %v954, %v1537
  %v1710 = vsel %vm1366, %v956, %v1538
  %v1711 = vsel %vm1367, %v959, %v1539
  %v1712 = vsel %vm1368, %v961, %v1540
  %v1713 = vsel %vm1369, %v964, %v1541
  %v1714 = vsel %vm1370, %v966, %v1542
  %v1715 = vsel %vm1371, %v969, %v1543
  %v1716 = vsel %vm1372, %v971, %v1544
  %v1717 = vsel %vm1373, %v974, %v1545
  %v1718 = vsel %vm1374, %v976, %v1546
  %v1719 = vsel %vm1375, %v979, %v1547
  %v1720 = vsel %vm1376, %v981, %v1548
  %v1721 = vsel %vm1377, %v984, %v1549
  %v1722 = vsel %vm1378, %v986, %v1550
  %v1723 = vsel %vm1379, %v989, %v1551
  %v1724 = vsel %vm1380, %v991, %v1552
  %v1725 = vsel %vm1381, %v994, %v1553
  %v1726 = vsel %vm1382, %v996, %v1554
  %v1727 = vsel %vm1383, %v999, %v1555
  %v1728 = vsel %vm1384, %v1001, %v1556
  %v1729 = vsel %vm1385, %v1004, %v1557
  %v1730 = vsel %vm1386, %v1006, %v1558
  %v1731 = vsel %vm1387, %v1009, %v1559
  %v1732 = vsel %vm1388, %v1011, %v1560
  %v1733 = vsel %vm1389, %v1014, %v1561
  %v1734 = vsel %vm1390, %v1016, %v1562
  %v1735 = vsel %vm1391, %v1019, %v1563
  %v1736 = vsel %vm1392, %v1021, %v1564
  %v1737 = vsel %vm1393, %v1024, %v1565
  %v1738 = vsel %vm1394, %v1026, %v1566
  %v1739 = vsel %vm1395, %v1029, %v1567
  %v1740 = vsel %vm1396, %v1031, %v1568
  %v1741 = vsel %vm1397, %v1034, %v1569
  %v1742 = vsel %vm1398, %v1036, %v1570
  %v1743 = vsel %vm1399, %v1039, %v1571
  %v1744 = vsel %vm1400, %v1041, %v1572
  %v1745 = vsel %vm1401, %v1044, %v1573
  %v1746 = vsel %vm1402, %v1046, %v1574
  %v1747 = vsel %vm1403, %v1049, %v1575
  %v1748 = vsel %vm1404, %v1051, %v1576
  %v1749 = vsel %vm1405, %v1054, %v1577
  %v1750 = vsel %vm1406, %v1056, %v1578
  %v1751 = vsel %vm1407, %v1059, %v1579
  %v1752 = vsel %vm1408, %v1061, %v1580
  %v1753 = vsel %vm1409, %v1064, %v1581
  %v1754 = vsel %vm1410, %v1066, %v1582
  %v1755 = vsel %vm1411, %v1069, %v1583
  %v1756 = vsel %vm1412, %v1071, %v1584
  %v1757 = vsel %vm1413, %v1074, %v1585
  %v1758 = vsel %vm1414, %v1076, %v1586
  %v1759 = vsel %vm1415, %v1079, %v1587
  %v1760 = vsel %vm1416, %v1081, %v1588
  %v1761 = vsel %vm1417, %v1084, %v1589
  %v1762 = vsel %vm1418, %v1086, %v1590
  %v1763 = vsel %vm1419, %v1089, %v1591
  %v1764 = vsel %vm1420, %v1091, %v1592
  %v1765 = vsel %vm1421, %v1094, %v1593
  %v1766 = vsel %vm1422, %v1096, %v1594
  %v1767 = vsel %vm1423, %v1099, %v1595
  %v1768 = vsel %vm1424, %v1101, %v1596
  %v1769 = vsel %vm1425, %v1104, %v1597
  %v1770 = vsel %vm1426, %v1106, %v1598
  %v1771 = vsel %vm1427, %v1109, %v1599
  %v1772 = vsel %vm1428, %v1111, %v1600
  %v1773 = vsel %vm1429, %v1114, %v1601
  %v1774 = vsel %vm1430, %v1116, %v1602
  %v1775 = vsel %vm1431, %v1119, %v1603
  %v1776 = vsel %vm1432, %v1121, %v1604
  %v1777 = vsel %vm1433, %v1124, %v1605
  %v1778 = vsel %vm1434, %v1126, %v1606
  %v1779 = vsel %vm1435, %v1129, %v1607
  %v1780 = vsel %vm1436, %v1131, %v1608
  %v1781 = vsel %vm1437, %v1134, %v1609
  %v1782 = vsel %vm1438, %v1136, %v1610
  %v1783 = vsel %vm1439, %v1139, %v1611
  %v1784 = vsel %vm1440, %v1141, %v1612
  %v1785 = vsel %vm1441, %v1144, %v1613
  %v1786 = vsel %vm1442, %v1146, %v1614
  %v1787 = vsel %vm1443, %v1149, %v1615
  %v1788 = vsel %vm1444, %v1151, %v1616
  %v1789 = vsel %vm1445, %v1154, %v1617
  %v1790 = vsel %vm1446, %v1156, %v1618
  %v1791 = vsel %vm1447, %v1159, %v1619
  %v1792 = vsel %vm1448, %v1161, %v1620
  %v1793 = vsel %vm1449, %v1164, %v1621
  %v1794 = vsel %vm1450, %v1166, %v1622
  %v1795 = vsel %vm1451, %v1169, %v1623
  %v1796 = vsel %vm1452, %v1171, %v1624
  %v1797 = vsel %vm1453, %v1174, %v1625
  %v1798 = vsel %vm1454, %v1176, %v1626
  %v1799 = vsel %vm1455, %v1179, %v1627
  %v1800 = vsel %vm1456, %v1181, %v1628
  %v1801 = vsel %vm1457, %v1184, %v1629
  %v1802 = vsel %vm1458, %v1186, %v1630
  %v1803 = vsel %vm1459, %v1189, %v1631
  %v1804 = vsel %vm1460, %v1191, %v1632
  %v1805 = vsel %vm1461, %v1194, %v1633
  %v1806 = vsel %vm1462, %v1196, %v1634
  %v1807 = vsel %vm1463, %v1199, %v1635
  %v1808 = vsel %vm1464, %v1201, %v1636
  %v1809 = vsel %vm1465, %v1204, %v1637
  %v1810 = vsel %vm1466, %v1206, %v1638
  %v1811 = vsel %vm1467, %v1209, %v1639
  %v1812 = vsel %vm1468, %v1211, %v1640
  %v1813 = vsel %vm1469, %v1214, %v1641
  %v1814 = vsel %vm1470, %v1216, %v1642
  %v1815 = vsel %vm1471, %v1219, %v1643
  %v1816 = vsel %vm1472, %v1221, %v1644
  %v1817 = vsel %vm1473, %v1224, %v1645
  %v1818 = vsel %vm1474, %v1226, %v1646
  %v1819 = vsel %vm1475, %v1229, %v1647
  %v1820 = vsel %vm1476, %v1231, %v1648
  %v1821 = vsel %vm1477, %v1234, %v1649
  %v1822 = vsel %vm1478, %v1236, %v1650
  %v1823 = vsel %vm1479, %v1239, %v1651
  %v1824 = vsel %vm1480, %v1241, %v1652
  %v1825 = vsel %vm1481, %v1244, %v1653
  %v1826 = vsel %vm1482, %v1246, %v1654
  %v1827 = vsel %vm1483, %v1249, %v1655
  %v1828 = vsel %vm1484, %v1251, %v1656
  %v1829 = vsel %vm1485, %v1254, %v1657
  %v1830 = vsel %vm1486, %v1256, %v1658
  %v1831 = vsel %vm1487, %v1259, %v1659
  %v1832 = vsel %vm1488, %v1261, %v1660
  %v1833 = vsel %vm1489, %v1264, %v1661
  %v1834 = vsel %vm1490, %v1266, %v1662
  %v1835 = vsel %vm1491, %v1269, %v1663
  %v1836 = vsel %vm1492, %v1271, %v1664
  %v1837 = vsel %vm1493, %v1274, %v1665
  %v1838 = vsel %vm1494, %v1276, %v1666
  %v1839 = vsel %vm1495, %v1279, %v1667
  %v1840 = vsel %vm1496, %v1281, %v1668
  %v1841 = vsel %vm1497, %v1284, %v1669
  %v1842 = vsel %vm1498, %v1286, %v1670
  %v1843 = vsel %vm1499, %v1289, %v1671
  %v1844 = vsel %vm1500, %v1291, %v1672
  %v1845 = vsel %vm1501, %v1294, %v1673
  %v1846 = vsel %vm1502, %v1296, %v1674
  %v1847 = vsel %vm1503, %v1299, %v1675
  %v1848 = vsel %vm1504, %v1301, %v1676
  %v1849 = vsel %vm1505, %v1304, %v1677
  %v1850 = vsel %vm1506, %v1306, %v1678
  %v1851 = vsel %vm1507, %v1309, %v1679
  %v1852 = vsel %vm1508, %v1311, %v1680
  %v1853 = vsel %vm1509, %v1314, %v1681
  %v1854 = vsel %vm1510, %v1316, %v1682
  %v1855 = vsel %vm1511, %v1319, %v1683
  %v1856 = vsel %vm1512, %v1321, %v1684
  %v1857 = vsel %vm1513, %v1324, %v1685
  %v1858 = vsel %vm1514, %v1326, %v1686
  %v1859 = vsel %vm1515, %v1329, %v1687
  %v1860 = vsel %vm1516, %v1331, %v1688
  %v1861 = vsel %vm1517, %v1334, %v1689
  %v1862 = vsel %vm1518, %v1336, %v1690
  %v1863 = vsel %vm1519, %v1339, %v1691
  %v1864 = vsel %vm1520, %v1341, %v1692
  %v1865 = vsel %vm1521, %v1344, %v1693
  %v1866 = vsel %vm1522, %v1346, %v1694
  %v1867 = vsel %vm1523, %v1349, %v1695
  %v1868 = vsel %vm1524, %v1351, %v1696
  %v1869 = vadd.f32 %v1697, %v1740
  %v1870 = vadd.f32 %v1698, %v1741
  %v1871 = vadd.f32 %v1699, %v1742
  %v1872 = vadd.f32 %v1700, %v1743
  %v1873 = vadd.f32 %v1701, %v1744
  %v1874 = vadd.f32 %v1702, %v1745
  %v1875 = vadd.f32 %v1703, %v1746
  %v1876 = vadd.f32 %v1704, %v1747
  %v1877 = vadd.f32 %v1705, %v1748
  %v1878 = vadd.f32 %v1706, %v1749
  %v1879 = vadd.f32 %v1707, %v1750
  %v1880 = vadd.f32 %v1708, %v1751
  %v1881 = vadd.f32 %v1709, %v1752
  %v1882 = vadd.f32 %v1710, %v1753
  %v1883 = vadd.f32 %v1711, %v1754
  %v1884 = vadd.f32 %v1712, %v1755
  %v1885 = vadd.f32 %v1713, %v1756
  %v1886 = vadd.f32 %v1714, %v1757
  %v1887 = vadd.f32 %v1715, %v1758
  %v1888 = vadd.f32 %v1716, %v1759
  %v1889 = vadd.f32 %v1717, %v1760
  %v1890 = vadd.f32 %v1718, %v1761
  %v1891 = vadd.f32 %v1719, %v1762
  %v1892 = vadd.f32 %v1720, %v1763
  %v1893 = vadd.f32 %v1721, %v1764
  %v1894 = vadd.f32 %v1722, %v1765
  %v1895 = vadd.f32 %v1723, %v1766
  %v1896 = vadd.f32 %v1724, %v1767
  %v1897 = vadd.f32 %v1725, %v1768
  %v1898 = vadd.f32 %v1726, %v1769
  %v1899 = vadd.f32 %v1727, %v1770
  %v1900 = vadd.f32 %v1728, %v1771
  %v1901 = vadd.f32 %v1729, %v1772
  %v1902 = vadd.f32 %v1730, %v1773
  %v1903 = vadd.f32 %v1731, %v1774
  %v1904 = vadd.f32 %v1732, %v1775
  %v1905 = vadd.f32 %v1733, %v1776
  %v1906 = vadd.f32 %v1734, %v1777
  %v1907 = vadd.f32 %v1735, %v1778
  %v1908 = vadd.f32 %v1736, %v1779
  %v1909 = vadd.f32 %v1737, %v1780
  %v1910 = vadd.f32 %v1738, %v1781
  %v1911 = vadd.f32 %v1739, %v1782
  %v1912 = vadd.f32 %v1869, %v1783
  %v1913 = vadd.f32 %v1870, %v1784
  %v1914 = vadd.f32 %v1871, %v1785
  %v1915 = vadd.f32 %v1872, %v1786
  %v1916 = vadd.f32 %v1873, %v1787
  %v1917 = vadd.f32 %v1874, %v1788
  %v1918 = vadd.f32 %v1875, %v1789
  %v1919 = vadd.f32 %v1876, %v1790
  %v1920 = vadd.f32 %v1877, %v1791
  %v1921 = vadd.f32 %v1878, %v1792
  %v1922 = vadd.f32 %v1879, %v1793
  %v1923 = vadd.f32 %v1880, %v1794
  %v1924 = vadd.f32 %v1881, %v1795
  %v1925 = vadd.f32 %v1882, %v1796
  %v1926 = vadd.f32 %v1883, %v1797
  %v1927 = vadd.f32 %v1884, %v1798
  %v1928 = vadd.f32 %v1885, %v1799
  %v1929 = vadd.f32 %v1886, %v1800
  %v1930 = vadd.f32 %v1887, %v1801
  %v1931 = vadd.f32 %v1888, %v1802
  %v1932 = vadd.f32 %v1889, %v1803
  %v1933 = vadd.f32 %v1890, %v1804
  %v1934 = vadd.f32 %v1891, %v1805
  %v1935 = vadd.f32 %v1892, %v1806
  %v1936 = vadd.f32 %v1893, %v1807
  %v1937 = vadd.f32 %v1894, %v1808
  %v1938 = vadd.f32 %v1895, %v1809
  %v1939 = vadd.f32 %v1896, %v1810
  %v1940 = vadd.f32 %v1897, %v1811
  %v1941 = vadd.f32 %v1898, %v1812
  %v1942 = vadd.f32 %v1899, %v1813
  %v1943 = vadd.f32 %v1900, %v1814
  %v1944 = vadd.f32 %v1901, %v1815
  %v1945 = vadd.f32 %v1902, %v1816
  %v1946 = vadd.f32 %v1903, %v1817
  %v1947 = vadd.f32 %v1904, %v1818
  %v1948 = vadd.f32 %v1905, %v1819
  %v1949 = vadd.f32 %v1906, %v1820
  %v1950 = vadd.f32 %v1907, %v1821
  %v1951 = vadd.f32 %v1908, %v1822
  %v1952 = vadd.f32 %v1909, %v1823
  %v1953 = vadd.f32 %v1910, %v1824
  %v1954 = vadd.f32 %v1911, %v1825
  %v1955 = vadd.f32 %v1912, %v1826
  %v1956 = vadd.f32 %v1913, %v1827
  %v1957 = vadd.f32 %v1914, %v1828
  %v1958 = vadd.f32 %v1915, %v1829
  %v1959 = vadd.f32 %v1916, %v1830
  %v1960 = vadd.f32 %v1917, %v1831
  %v1961 = vadd.f32 %v1918, %v1832
  %v1962 = vadd.f32 %v1919, %v1833
  %v1963 = vadd.f32 %v1920, %v1834
  %v1964 = vadd.f32 %v1921, %v1835
  %v1965 = vadd.f32 %v1922, %v1836
  %v1966 = vadd.f32 %v1923, %v1837
  %v1967 = vadd.f32 %v1924, %v1838
  %v1968 = vadd.f32 %v1925, %v1839
  %v1969 = vadd.f32 %v1926, %v1840
  %v1970 = vadd.f32 %v1927, %v1841
  %v1971 = vadd.f32 %v1928, %v1842
  %v1972 = vadd.f32 %v1929, %v1843
  %v1973 = vadd.f32 %v1930, %v1844
  %v1974 = vadd.f32 %v1931, %v1845
  %v1975 = vadd.f32 %v1932, %v1846
  %v1976 = vadd.f32 %v1933, %v1847
  %v1977 = vadd.f32 %v1934, %v1848
  %v1978 = vadd.f32 %v1935, %v1849
  %v1979 = vadd.f32 %v1936, %v1850
  %v1980 = vadd.f32 %v1937, %v1851
  %v1981 = vadd.f32 %v1938, %v1852
  %v1982 = vadd.f32 %v1939, %v1853
  %v1983 = vadd.f32 %v1940, %v1854
  %v1984 = vadd.f32 %v1941, %v1855
  %v1985 = vadd.f32 %v1942, %v1856
  %v1986 = vadd.f32 %v1943, %v1857
  %v1987 = vadd.f32 %v1944, %v1858
  %v1988 = vadd.f32 %v1945, %v1859
  %v1989 = vadd.f32 %v1946, %v1860
  %v1990 = vadd.f32 %v1947, %v1861
  %v1991 = vadd.f32 %v1948, %v1862
  %v1992 = vadd.f32 %v1949, %v1863
  %v1993 = vadd.f32 %v1950, %v1864
  %v1994 = vadd.f32 %v1951, %v1865
  %v1995 = vadd.f32 %v1952, %v1866
  %v1996 = vadd.f32 %v1953, %v1867
  %v1997 = vadd.f32 %v1954, %v1868
  %v1998 = vmul.f32 %v1955, 0.25
  %v1999 = vmul.f32 %v1956, 0.25
  %v2000 = vmul.f32 %v1957, 0.25
  %v2001 = vmul.f32 %v1958, 0.25
  %v2002 = vmul.f32 %v1959, 0.25
  %v2003 = vmul.f32 %v1960, 0.25
  %v2004 = vmul.f32 %v1961, 0.25
  %v2005 = vmul.f32 %v1962, 0.25
  %v2006 = vmul.f32 %v1963, 0.25
  %v2007 = vmul.f32 %v1964, 0.25
  %v2008 = vmul.f32 %v1965, 0.25
  %v2009 = vmul.f32 %v1966, 0.25
  %v2010 = vmul.f32 %v1967, 0.25
  %v2011 = vmul.f32 %v1968, 0.25
  %v2012 = vmul.f32 %v1969, 0.25
  %v2013 = vmul.f32 %v1970, 0.25
  %v2014 = vmul.f32 %v1971, 0.25
  %v2015 = vmul.f32 %v1972, 0.25
  %v2016 = vmul.f32 %v1973, 0.25
  %v2017 = vmul.f32 %v1974, 0.25
  %v2018 = vmul.f32 %v1975, 0.25
  %v2019 = vmul.f32 %v1976, 0.25
  %v2020 = vmul.f32 %v1977, 0.25
  %v2021 = vmul.f32 %v1978, 0.25
  %v2022 = vmul.f32 %v1979, 0.25
  %v2023 = vmul.f32 %v1980, 0.25
  %v2024 = vmul.f32 %v1981, 0.25
  %v2025 = vmul.f32 %v1982, 0.25
  %v2026 = vmul.f32 %v1983, 0.25
  %v2027 = vmul.f32 %v1984, 0.25
  %v2028 = vmul.f32 %v1985, 0.25
  %v2029 = vmul.f32 %v1986, 0.25
  %v2030 = vmul.f32 %v1987, 0.25
  %v2031 = vmul.f32 %v1988, 0.25
  %v2032 = vmul.f32 %v1989, 0.25
  %v2033 = vmul.f32 %v1990, 0.25
  %v2034 = vmul.f32 %v1991, 0.25
  %v2035 = vmul.f32 %v1992, 0.25
  %v2036 = vmul.f32 %v1993, 0.25
  %v2037 = vmul.f32 %v1994, 0.25
  %v2038 = vmul.f32 %v1995, 0.25
  %v2039 = vmul.f32 %v1996, 0.25
  %v2040 = vmul.f32 %v1997, 0.25
  %vm2041 = vcmask 48128
  %2042 = vst.msk [vmem:[%s3] sm:$0xff] %vm2041, %v1998
  %2043 = vst.msk [vmem:[%s3 + $0x8] sm:$0xff] %vm2041, %v1999
  %2044 = vst.msk [vmem:[%s3 + $0x10] sm:$0xff] %vm2041, %v2000
  %2045 = vst.msk [vmem:[%s3 + $0x18] sm:$0xff] %vm2041, %v2001
  %2046 = vst.msk [vmem:[%s3 + $0x20] sm:$0xff] %vm2041, %v2002
  %2047 = vst.msk [vmem:[%s3 + $0x28] sm:$0xff] %vm2041, %v2003
  %2048 = vst.msk [vmem:[%s3 + $0x30] sm:$0xff] %vm2041, %v2004
  %2049 = vst.msk [vmem:[%s3 + $0x38] sm:$0xff] %vm2041, %v2005
  %2050 = vst.msk [vmem:[%s3 + $0x40] sm:$0xff] %vm2041, %v2006
  %2051 = vst.msk [vmem:[%s3 + $0x48] sm:$0xff] %vm2041, %v2007
  %2052 = vst.msk [vmem:[%s3 + $0x50] sm:$0xff] %vm2041, %v2008
  %2053 = vst.msk [vmem:[%s3 + $0x58] sm:$0xff] %vm2041, %v2009
  %2054 = vst.msk [vmem:[%s3 + $0x60] sm:$0xff] %vm2041, %v2010
  %2055 = vst.msk [vmem:[%s3 + $0x68] sm:$0xff] %vm2041, %v2011
  %2056 = vst.msk [vmem:[%s3 + $0x70] sm:$0xff] %vm2041, %v2012
  %2057 = vst.msk [vmem:[%s3 + $0x78] sm:$0xff] %vm2041, %v2013
  %2058 = vst.msk [vmem:[%s3 + $0x80] sm:$0xff] %vm2041, %v2014
  %2059 = vst.msk [vmem:[%s3 + $0x88] sm:$0xff] %vm2041, %v2015
  %2060 = vst.msk [vmem:[%s3 + $0x90] sm:$0xff] %vm2041, %v2016
  %2061 = vst.msk [vmem:[%s3 + $0x98] sm:$0xff] %vm2041, %v2017
  %2062 = vst.msk [vmem:[%s3 + $0xa0] sm:$0xff] %vm2041, %v2018
  %2063 = vst.msk [vmem:[%s3 + $0xa8] sm:$0xff] %vm2041, %v2019
  %2064 = vst.msk [vmem:[%s3 + $0xb0] sm:$0xff] %vm2041, %v2020
  %2065 = vst.msk [vmem:[%s3 + $0xb8] sm:$0xff] %vm2041, %v2021
  %2066 = vst.msk [vmem:[%s3 + $0xc0] sm:$0xff] %vm2041, %v2022
  %2067 = vst.msk [vmem:[%s3 + $0xc8] sm:$0xff] %vm2041, %v2023
  %2068 = vst.msk [vmem:[%s3 + $0xd0] sm:$0xff] %vm2041, %v2024
  %2069 = vst.msk [vmem:[%s3 + $0xd8] sm:$0xff] %vm2041, %v2025
  %2070 = vst.msk [vmem:[%s3 + $0xe0] sm:$0xff] %vm2041, %v2026
  %2071 = vst.msk [vmem:[%s3 + $0xe8] sm:$0xff] %vm2041, %v2027
  %2072 = vst.msk [vmem:[%s3 + $0xf0] sm:$0xff] %vm2041, %v2028
  %2073 = vst.msk [vmem:[%s3 + $0xf8] sm:$0xff] %vm2041, %v2029
  %2074 = vst.msk [vmem:[%s3 + $0x100] sm:$0xff] %vm2041, %v2030
  %2075 = vst.msk [vmem:[%s3 + $0x108] sm:$0xff] %vm2041, %v2031
  %2076 = vst.msk [vmem:[%s3 + $0x110] sm:$0xff] %vm2041, %v2032
  %2077 = vst.msk [vmem:[%s3 + $0x118] sm:$0xff] %vm2041, %v2033
  %2078 = vst.msk [vmem:[%s3 + $0x120] sm:$0xff] %vm2041, %v2034
  %2079 = vst.msk [vmem:[%s3 + $0x128] sm:$0xff] %vm2041, %v2035
  %2080 = vst.msk [vmem:[%s3 + $0x130] sm:$0xff] %vm2041, %v2036
  %2081 = vst.msk [vmem:[%s3 + $0x138] sm:$0xff] %vm2041, %v2037
  %2082 = vst.msk [vmem:[%s3 + $0x140] sm:$0xff] %vm2041, %v2038
  %2083 = vst.msk [vmem:[%s3 + $0x148] sm:$0xff] %vm2041, %v2039
  %2084 = vst.msk [vmem:[%s3 + $0x150] sm:$0xff] %vm2041, %v2040
  // Predicated region
  $region14: #{lenet_forward.3} parent=0 // pred_check
    _
  $region15: #{lenet_forward.3} parent=0 // pred_check_branch
    %2086 = sbr.rel (0) target = $region17
  $region16: #{lenet_forward.3} parent=0 // pred_region
    _
  $region17: #{lenet_forward.3} parent=0 // pred_fallthru
    _
  // Predicated region
  $region18: #{lenet_forward.3} parent=0 // pred_check
    _
  $region19: #{lenet_forward.3} parent=0 // pred_check_branch
    %2088 = sbr.rel (0) target = $region21
  $region20: #{lenet_forward.3} parent=0 // pred_region
    _
  $region21: #{lenet_forward.3} parent=0 // pred_fallthru
    _

// kernel: lenet_forward.4
$region0: #{lenet_forward.4}
  #allocation0 [shape = 'u32[]', space=smem, size = 0x4, offset = 0x4, fixed_abs, tag = 'smem constant byte address 0x4 - core index']
  #allocation1 [shape = 'u32[72,128]{1,0:T(1,128)}', space=vmem, size = 0x9000, scoped, tag = 'internal scratch']
  %s0 = inlined_call_operand.vmem [shape: bf16[4,56,54], index: 0, kind: input, shape index: {}]
  %s1 = inlined_call_operand.vmem [shape: bf16[54,16], index: 1, kind: input, shape index: {}]
  %s2 = inlined_call_operand.vmem [shape: f32[1,16], index: 2, kind: input, shape index: {}]
  %s3 = inlined_call_operand.vmem [shape: f32[56,16], index: 3, kind: output, shape index: {}]
  %s4 = sld [smem:[#allocation0]]
  $region22: #{lenet_forward.4} parent=0
    _
  %s6 = ssub.s32 1, %s4
  %s7 = scalar_select 0, %s6, %s4
  // Predicated region
  $region2: #{lenet_forward.4} parent=0 // pred_check
    _
  $region3: #{lenet_forward.4} parent=0 // pred_check_branch
    %9 = sbr.rel (0) target = $region5
  $region4: #{lenet_forward.4} parent=0 // pred_region
    _
  $region5: #{lenet_forward.4} parent=0 // pred_fallthru
    _
  // Predicated region
  $region6: #{lenet_forward.4} parent=0 // pred_check
    _
  $region7: #{lenet_forward.4} parent=0 // pred_check_branch
    %11 = sbr.rel (0) target = $region9
  $region8: #{lenet_forward.4} parent=0 // pred_region
    _
  $region9: #{lenet_forward.4} parent=0 // pred_fallthru
    _
  // Predicated region
  $region10: #{lenet_forward.4} parent=0 // pred_check
    _
  $region11: #{lenet_forward.4} parent=0 // pred_check_branch
    %13 = sbr.rel (0) target = $region13
  $region12: #{lenet_forward.4} parent=0 // pred_region
    _
  $region13: #{lenet_forward.4} parent=0 // pred_fallthru
    _
  %v15 = vld [vmem:[%s0] sm:$0xf]
  %v16 = vld [vmem:[%s0 + $0x4] sm:$0xf]
  %v17 = vld [vmem:[%s0 + $0x8] sm:$0xf]
  %v18 = vld [vmem:[%s0 + $0xc] sm:$0xf]
  %v19 = vld [vmem:[%s0 + $0x10] sm:$0xf]
  %v20 = vld [vmem:[%s0 + $0x14] sm:$0xf]
  %v21 = vld [vmem:[%s0 + $0x18] sm:$0xf]
  %v22 = vld [vmem:[%s0 + $0x1c] sm:$0xf]
  %v23 = vld [vmem:[%s0 + $0x20] sm:$0xf]
  %v24 = vld [vmem:[%s0 + $0x24] sm:$0xf]
  %v25 = vld [vmem:[%s0 + $0x28] sm:$0xf]
  %v26 = vld [vmem:[%s0 + $0x2c] sm:$0xf]
  %v27 = vld [vmem:[%s0 + $0x30] sm:$0xf]
  %v28 = vld [vmem:[%s0 + $0x34] sm:$0xf]
  %v29 = vld [vmem:[%s0 + $0x38] sm:$0xf]
  %v30 = vld [vmem:[%s0 + $0x3c] sm:$0xf]
  %v31 = vld [vmem:[%s0 + $0x40] sm:$0xf]
  %v32 = vld [vmem:[%s0 + $0x44] sm:$0xf]
  %v33 = vld [vmem:[%s0 + $0x48] sm:$0xf]
  %v34 = vld [vmem:[%s0 + $0x4c] sm:$0xf]
  %v35 = vld [vmem:[%s0 + $0x50] sm:$0xf]
  %v36 = vld [vmem:[%s0 + $0x54] sm:$0xf]
  %v37 = vld [vmem:[%s0 + $0x58] sm:$0xf]
  %v38 = vld [vmem:[%s0 + $0x5c] sm:$0xf]
  %v39 = vld [vmem:[%s0 + $0x60] sm:$0xf]
  %v40 = vld [vmem:[%s0 + $0x64] sm:$0xf]
  %v41 = vld [vmem:[%s0 + $0x68] sm:$0xf]
  %v42 = vld [vmem:[%s0 + $0x6c] sm:$0xf]
  %v43 = vld [vmem:[%s1] sm:$0xf]
  %v44 = vld [vmem:[%s1 + $0x4] sm:$0xf]
  %v45 = vld [vmem:[%s1 + $0x8] sm:$0xf]
  %v46 = vld [vmem:[%s1 + $0xc] sm:$0xf]
  %v47 = vld [vmem:[%s1 + $0x10] sm:$0xf]
  %v48 = vld [vmem:[%s1 + $0x14] sm:$0xf]
  %v49 = vld [vmem:[%s1 + $0x18] sm:$0x7]
  %v50 = vld [vmem:[%s2] sm:$0x1]
  %v52 = vperm.slane %v50, 0
  %v82 = vunpack.c.l.b16 %v15
  %v83 = vunpack.c.l.b16 %v16
  %v84 = vunpack.c.l.b16 %v17
  %v85 = vunpack.c.l.b16 %v18
  %v86 = vunpack.c.l.b16 %v19
  %v87 = vunpack.c.l.b16 %v20
  %v88 = vunpack.c.l.b16 %v21
  %v89 = vunpack.c.l.b16 %v22
  %v90 = vunpack.c.l.b16 %v23
  %v91 = vunpack.c.l.b16 %v24
  %v92 = vunpack.c.l.b16 %v25
  %v93 = vunpack.c.l.b16 %v26
  %v94 = vunpack.c.l.b16 %v27
  %v95 = vunpack.c.l.b16 %v28
  %v96 = vunpack.c.l.b16 %v29
  %v97 = vunpack.c.l.b16 %v30
  %v98 = vunpack.c.l.b16 %v31
  %v99 = vunpack.c.l.b16 %v32
  %v100 = vunpack.c.l.b16 %v33
  %v101 = vunpack.c.l.b16 %v34
  %v102 = vunpack.c.l.b16 %v35
  %v103 = vunpack.c.l.b16 %v36
  %v104 = vunpack.c.l.b16 %v37
  %v105 = vunpack.c.l.b16 %v38
  %v106 = vunpack.c.l.b16 %v39
  %v107 = vunpack.c.l.b16 %v40
  %v108 = vunpack.c.l.b16 %v41
  %v109 = vunpack.c.l.b16 %v42
  %v110 = vpack.c.b16 %v83, %v82
  %v111 = vpack.c.b16 %v85, %v84
  %v112 = vpack.c.b16 %v87, %v86
  %v113 = vpack.c.b16 %v89, %v88
  %v114 = vpack.c.b16 %v91, %v90
  %v115 = vpack.c.b16 %v93, %v92
  %v116 = vpack.c.b16 %v95, %v94
  %v117 = vpack.c.b16 %v97, %v96
  %v118 = vpack.c.b16 %v99, %v98
  %v119 = vpack.c.b16 %v101, %v100
  %v120 = vpack.c.b16 %v103, %v102
  %v121 = vpack.c.b16 %v105, %v104
  %v122 = vpack.c.b16 %v107, %v106
  %v123 = vpack.c.b16 %v109, %v108
  %v131 = vunpack.c.l.b16 %v43
  %v132 = vunpack.c.l.b16 %v44
  %v133 = vunpack.c.l.b16 %v45
  %v134 = vunpack.c.l.b16 %v46
  %v135 = vunpack.c.l.b16 %v47
  %v136 = vunpack.c.l.b16 %v48
  %v137 = vunpack.c.l.b16 %v49
  %v138 = vpack.c.b16 %v132, %v131
  %v139 = vpack.c.b16 %v134, %v133
  %v140 = vpack.c.b16 %v136, %v135
  %v141 = vpack.c.b16 %v137, %v137
  %vm145 = vcmask 441344
  %v147 = vsel %vm145, %v110, 0
  %v150 = vsel %vm145, %v111, 0
  %v153 = vsel %vm145, %v112, 0
  %v156 = vsel %vm145, %v113, 0
  %v159 = vsel %vm145, %v114, 0
  %v162 = vsel %vm145, %v115, 0
  %v165 = vsel %vm145, %v116, 0
  %v168 = vsel %vm145, %v117, 0
  %v171 = vsel %vm145, %v118, 0
  %v174 = vsel %vm145, %v119, 0
  %v177 = vsel %vm145, %v120, 0
  %v180 = vsel %vm145, %v121, 0
  %v183 = vsel %vm145, %v122, 0
  %v186 = vsel %vm145, %v123, 0
  %vm188 = vcmask 1042432
  %v190 = vsel %vm188, %v141, 0
  %192 = vmatpush.bf16.msra.mxu0 0
  %193 = vmatpush.bf16.msra.mxu0 0
  %194 = vmatpush.bf16.msra.mxu0 0
  %195 = vmatpush.bf16.msra.mxu0 0
  %196 = vmatpush.bf16.msra.mxu0 %v190
  %197 = vmatpush.bf16.msra.mxu0 %v140
  %198 = vmatpush.bf16.msra.mxu0 %v139
  %199 = vmatpush.bf16.msra.mxu0 %v138
  %200 = vmatmul.bf16.gmra.mxu0 %v147
  %v201 = vpop.f32.mrf.mxu0
  %v202 = vadd.f32 %v52, %v201
  %v203 = vpop.f32.mrf.mxu0
  %v204 = vadd.f32 %v52, %v203
  %205 = vmatmul.bf16.gmra.mxu0 %v150
  %v206 = vpop.f32.mrf.mxu0
  %v207 = vadd.f32 %v52, %v206
  %v208 = vpop.f32.mrf.mxu0
  %v209 = vadd.f32 %v52, %v208
  %210 = vmatmul.bf16.gmra.mxu0 %v153
  %v211 = vpop.f32.mrf.mxu0
  %v212 = vadd.f32 %v52, %v211
  %v213 = vpop.f32.mrf.mxu0
  %v214 = vadd.f32 %v52, %v213
  %215 = vmatmul.bf16.gmra.mxu0 %v156
  %v216 = vpop.f32.mrf.mxu0
  %v217 = vadd.f32 %v52, %v216
  %v218 = vpop.f32.mrf.mxu0
  %v219 = vadd.f32 %v52, %v218
  %220 = vmatmul.bf16.gmra.mxu0 %v159
  %v221 = vpop.f32.mrf.mxu0
  %v222 = vadd.f32 %v52, %v221
  %v223 = vpop.f32.mrf.mxu0
  %v224 = vadd.f32 %v52, %v223
  %225 = vmatmul.bf16.gmra.mxu0 %v162
  %v226 = vpop.f32.mrf.mxu0
  %v227 = vadd.f32 %v52, %v226
  %v228 = vpop.f32.mrf.mxu0
  %v229 = vadd.f32 %v52, %v228
  %230 = vmatmul.bf16.gmra.mxu0 %v165
  %v231 = vpop.f32.mrf.mxu0
  %v232 = vadd.f32 %v52, %v231
  %v233 = vpop.f32.mrf.mxu0
  %v234 = vadd.f32 %v52, %v233
  %235 = vmatmul.bf16.gmra.mxu0 %v168
  %v236 = vpop.f32.mrf.mxu0
  %v237 = vadd.f32 %v52, %v236
  %v238 = vpop.f32.mrf.mxu0
  %v239 = vadd.f32 %v52, %v238
  %240 = vmatmul.bf16.gmra.mxu0 %v171
  %v241 = vpop.f32.mrf.mxu0
  %v242 = vadd.f32 %v52, %v241
  %v243 = vpop.f32.mrf.mxu0
  %v244 = vadd.f32 %v52, %v243
  %245 = vmatmul.bf16.gmra.mxu0 %v174
  %v246 = vpop.f32.mrf.mxu0
  %v247 = vadd.f32 %v52, %v246
  %v248 = vpop.f32.mrf.mxu0
  %v249 = vadd.f32 %v52, %v248
  %250 = vmatmul.bf16.gmra.mxu0 %v177
  %v251 = vpop.f32.mrf.mxu0
  %v252 = vadd.f32 %v52, %v251
  %v253 = vpop.f32.mrf.mxu0
  %v254 = vadd.f32 %v52, %v253
  %255 = vmatmul.bf16.gmra.mxu0 %v180
  %v256 = vpop.f32.mrf.mxu0
  %v257 = vadd.f32 %v52, %v256
  %v258 = vpop.f32.mrf.mxu0
  %v259 = vadd.f32 %v52, %v258
  %260 = vmatmul.bf16.gmra.mxu0 %v183
  %v261 = vpop.f32.mrf.mxu0
  %v262 = vadd.f32 %v52, %v261
  %v263 = vpop.f32.mrf.mxu0
  %v264 = vadd.f32 %v52, %v263
  %265 = vmatmul.bf16.gmra.mxu0 %v186
  %v266 = vpop.f32.mrf.mxu0
  %v267 = vadd.f32 %v52, %v266
  %v268 = vpop.f32.mrf.mxu0
  %v269 = vadd.f32 %v52, %v268
  %270 = vdwg.mxu0
  %vm271 = vcmp.gt.f32.partialorder %v202, 0.0
  %vm272 = vcmp.gt.f32.partialorder %v204, 0.0
  %vm273 = vcmp.gt.f32.partialorder %v207, 0.0
  %vm274 = vcmp.gt.f32.partialorder %v209, 0.0
  %vm275 = vcmp.gt.f32.partialorder %v212, 0.0
  %vm276 = vcmp.gt.f32.partialorder %v214, 0.0
  %vm277 = vcmp.gt.f32.partialorder %v217, 0.0
  %vm278 = vcmp.gt.f32.partialorder %v219, 0.0
  %vm279 = vcmp.gt.f32.partialorder %v222, 0.0
  %vm280 = vcmp.gt.f32.partialorder %v224, 0.0
  %vm281 = vcmp.gt.f32.partialorder %v227, 0.0
  %vm282 = vcmp.gt.f32.partialorder %v229, 0.0
  %vm283 = vcmp.gt.f32.partialorder %v232, 0.0
  %vm284 = vcmp.gt.f32.partialorder %v234, 0.0
  %vm285 = vcmp.gt.f32.partialorder %v237, 0.0
  %vm286 = vcmp.gt.f32.partialorder %v239, 0.0
  %vm287 = vcmp.gt.f32.partialorder %v242, 0.0
  %vm288 = vcmp.gt.f32.partialorder %v244, 0.0
  %vm289 = vcmp.gt.f32.partialorder %v247, 0.0
  %vm290 = vcmp.gt.f32.partialorder %v249, 0.0
  %vm291 = vcmp.gt.f32.partialorder %v252, 0.0
  %vm292 = vcmp.gt.f32.partialorder %v254, 0.0
  %vm293 = vcmp.gt.f32.partialorder %v257, 0.0
  %vm294 = vcmp.gt.f32.partialorder %v259, 0.0
  %vm295 = vcmp.gt.f32.partialorder %v262, 0.0
  %vm296 = vcmp.gt.f32.partialorder %v264, 0.0
  %vm297 = vcmp.gt.f32.partialorder %v267, 0.0
  %vm298 = vcmp.gt.f32.partialorder %v269, 0.0
  %v299 = vmul.f32 %v202, 0.2
  %v300 = vmul.f32 %v204, 0.2
  %v301 = vmul.f32 %v207, 0.2
  %v302 = vmul.f32 %v209, 0.2
  %v303 = vmul.f32 %v212, 0.2
  %v304 = vmul.f32 %v214, 0.2
  %v305 = vmul.f32 %v217, 0.2
  %v306 = vmul.f32 %v219, 0.2
  %v307 = vmul.f32 %v222, 0.2
  %v308 = vmul.f32 %v224, 0.2
  %v309 = vmul.f32 %v227, 0.2
  %v310 = vmul.f32 %v229, 0.2
  %v311 = vmul.f32 %v232, 0.2
  %v312 = vmul.f32 %v234, 0.2
  %v313 = vmul.f32 %v237, 0.2
  %v314 = vmul.f32 %v239, 0.2
  %v315 = vmul.f32 %v242, 0.2
  %v316 = vmul.f32 %v244, 0.2
  %v317 = vmul.f32 %v247, 0.2
  %v318 = vmul.f32 %v249, 0.2
  %v319 = vmul.f32 %v252, 0.2
  %v320 = vmul.f32 %v254, 0.2
  %v321 = vmul.f32 %v257, 0.2
  %v322 = vmul.f32 %v259, 0.2
  %v323 = vmul.f32 %v262, 0.2
  %v324 = vmul.f32 %v264, 0.2
  %v325 = vmul.f32 %v267, 0.2
  %v326 = vmul.f32 %v269, 0.2
  %v327 = vsel %vm271, %v202, %v299
  %v328 = vsel %vm272, %v204, %v300
  %v329 = vsel %vm273, %v207, %v301
  %v330 = vsel %vm274, %v209, %v302
  %v331 = vsel %vm275, %v212, %v303
  %v332 = vsel %vm276, %v214, %v304
  %v333 = vsel %vm277, %v217, %v305
  %v334 = vsel %vm278, %v219, %v306
  %v335 = vsel %vm279, %v222, %v307
  %v336 = vsel %vm280, %v224, %v308
  %v337 = vsel %vm281, %v227, %v309
  %v338 = vsel %vm282, %v229, %v310
  %v339 = vsel %vm283, %v232, %v311
  %v340 = vsel %vm284, %v234, %v312
  %v341 = vsel %vm285, %v237, %v313
  %v342 = vsel %vm286, %v239, %v314
  %v343 = vsel %vm287, %v242, %v315
  %v344 = vsel %vm288, %v244, %v316
  %v345 = vsel %vm289, %v247, %v317
  %v346 = vsel %vm290, %v249, %v318
  %v347 = vsel %vm291, %v252, %v319
  %v348 = vsel %vm292, %v254, %v320
  %v349 = vsel %vm293, %v257, %v321
  %v350 = vsel %vm294, %v259, %v322
  %v351 = vsel %vm295, %v262, %v323
  %v352 = vsel %vm296, %v264, %v324
  %v353 = vsel %vm297, %v267, %v325
  %v354 = vsel %vm298, %v269, %v326
  %v355 = vadd.f32 %v327, %v334
  %v356 = vadd.f32 %v328, %v335
  %v357 = vadd.f32 %v329, %v336
  %v358 = vadd.f32 %v330, %v337
  %v359 = vadd.f32 %v331, %v338
  %v360 = vadd.f32 %v332, %v339
  %v361 = vadd.f32 %v333, %v340
  %v362 = vadd.f32 %v355, %v341
  %v363 = vadd.f32 %v356, %v342
  %v364 = vadd.f32 %v357, %v343
  %v365 = vadd.f32 %v358, %v344
  %v366 = vadd.f32 %v359, %v345
  %v367 = vadd.f32 %v360, %v346
  %v368 = vadd.f32 %v361, %v347
  %v369 = vadd.f32 %v362, %v348
  %v370 = vadd.f32 %v363, %v349
  %v371 = vadd.f32 %v364, %v350
  %v372 = vadd.f32 %v365, %v351
  %v373 = vadd.f32 %v366, %v352
  %v374 = vadd.f32 %v367, %v353
  %v375 = vadd.f32 %v368, %v354
  %v376 = vmul.f32 %v369, 0.25
  %v377 = vmul.f32 %v370, 0.25
  %v378 = vmul.f32 %v371, 0.25
  %v379 = vmul.f32 %v372, 0.25
  %v380 = vmul.f32 %v373, 0.25
  %v381 = vmul.f32 %v374, 0.25
  %v382 = vmul.f32 %v375, 0.25
  %vm383 = vcmask 130048
  %384 = vst.msk [vmem:[%s3] sm:$0xff] %vm383, %v376
  %385 = vst.msk [vmem:[%s3 + $0x8] sm:$0xff] %vm383, %v377
  %386 = vst.msk [vmem:[%s3 + $0x10] sm:$0xff] %vm383, %v378
  %387 = vst.msk [vmem:[%s3 + $0x18] sm:$0xff] %vm383, %v379
  %388 = vst.msk [vmem:[%s3 + $0x20] sm:$0xff] %vm383, %v380
  %389 = vst.msk [vmem:[%s3 + $0x28] sm:$0xff] %vm383, %v381
  %390 = vst.msk [vmem:[%s3 + $0x30] sm:$0xff] %vm383, %v382
  // Predicated region
  $region14: #{lenet_forward.4} parent=0 // pred_check
    _
  $region15: #{lenet_forward.4} parent=0 // pred_check_branch
    %392 = sbr.rel (0) target = $region17
  $region16: #{lenet_forward.4} parent=0 // pred_region
    _
  $region17: #{lenet_forward.4} parent=0 // pred_fallthru
    _
  // Predicated region
  $region18: #{lenet_forward.4} parent=0 // pred_check
    _
  $region19: #{lenet_forward.4} parent=0 // pred_check_branch
    %394 = sbr.rel (0) target = $region21
  $region20: #{lenet_forward.4} parent=0 // pred_region
    _
  $region21: #{lenet_forward.4} parent=0 // pred_fallthru
    _

// kernel: lenet_forward.5
$region0: #{lenet_forward.5}
  #allocation0 [shape = 'u32[]', space=smem, size = 0x4, offset = 0x4, fixed_abs, tag = 'smem constant byte address 0x4 - core index']
  #allocation1 [shape = 'u32[72,128]{1,0:T(1,128)}', space=vmem, size = 0x9000, scoped, tag = 'internal scratch']
  #allocation2 [shape = 'f32[1,1]{1,0:T(1,128)S(1)}', space=vmem, size = 0x200, scoped, tag = 'scoped memory for lenet_forward.5']
  %s0 = inlined_call_operand.vmem [shape: bf16[8,400], index: 0, kind: input, shape index: {}]
  %s1 = inlined_call_operand.vmem [shape: bf16[400,120], index: 1, kind: input, shape index: {}]
  %s2 = inlined_call_operand.vmem [shape: f32[1,120], index: 2, kind: input, shape index: {}]
  %s3 = inlined_call_operand.vmem [shape: bf16[120,84], index: 3, kind: input, shape index: {}]
  %s4 = inlined_call_operand.vmem [shape: f32[1,84], index: 4, kind: input, shape index: {}]
  %s5 = inlined_call_operand.vmem [shape: bf16[84,20], index: 5, kind: input, shape index: {}]
  %s6 = inlined_call_operand.vmem [shape: f32[1,20], index: 6, kind: input, shape index: {}]
  %s7 = inlined_call_operand.vmem [shape: bf16[20,1], index: 7, kind: input, shape index: {}]
  %s8 = inlined_call_operand.<no memory space> [shape: f32[1,1], index: 8, kind: input, shape index: {}]
  %s9 = inlined_call_operand.vmem [shape: f32[8,1], index: 9, kind: output, shape index: {}]
  %s10 = sld [smem:[#allocation0]]
  $region46: #{lenet_forward.5} parent=0
    _
  %s12 = ssub.s32 1, %s10
  %s13 = scalar_select 0, %s12, %s10
  %v14 = vstv %s8
  %15 = vst [vmem:[#allocation2] sm:$0x1] %v14
  // Predicated region
  $region2: #{lenet_forward.5} parent=0 // pred_check
    _
  $region3: #{lenet_forward.5} parent=0 // pred_check_branch
    %17 = sbr.rel (0) target = $region5
  $region4: #{lenet_forward.5} parent=0 // pred_region
    _
  $region5: #{lenet_forward.5} parent=0 // pred_fallthru
    _
  // Predicated region
  $region6: #{lenet_forward.5} parent=0 // pred_check
    _
  $region7: #{lenet_forward.5} parent=0 // pred_check_branch
    %19 = sbr.rel (0) target = $region9
  $region8: #{lenet_forward.5} parent=0 // pred_region
    _
  $region9: #{lenet_forward.5} parent=0 // pred_fallthru
    _
  // Predicated region
  $region10: #{lenet_forward.5} parent=0 // pred_check
    _
  $region11: #{lenet_forward.5} parent=0 // pred_check_branch
    %21 = sbr.rel (0) target = $region13
  $region12: #{lenet_forward.5} parent=0 // pred_region
    _
  $region13: #{lenet_forward.5} parent=0 // pred_fallthru
    _
  // Predicated region
  $region14: #{lenet_forward.5} parent=0 // pred_check
    _
  $region15: #{lenet_forward.5} parent=0 // pred_check_branch
    %23 = sbr.rel (0) target = $region17
  $region16: #{lenet_forward.5} parent=0 // pred_region
    _
  $region17: #{lenet_forward.5} parent=0 // pred_fallthru
    _
  // Predicated region
  $region18: #{lenet_forward.5} parent=0 // pred_check
    _
  $region19: #{lenet_forward.5} parent=0 // pred_check_branch
    %25 = sbr.rel (0) target = $region21
  $region20: #{lenet_forward.5} parent=0 // pred_region
    _
  $region21: #{lenet_forward.5} parent=0 // pred_fallthru
    _
  // Predicated region
  $region22: #{lenet_forward.5} parent=0 // pred_check
    _
  $region23: #{lenet_forward.5} parent=0 // pred_check_branch
    %27 = sbr.rel (0) target = $region25
  $region24: #{lenet_forward.5} parent=0 // pred_region
    _
  $region25: #{lenet_forward.5} parent=0 // pred_fallthru
    _
  // Predicated region
  $region26: #{lenet_forward.5} parent=0 // pred_check
    _
  $region27: #{lenet_forward.5} parent=0 // pred_check_branch
    %29 = sbr.rel (0) target = $region29
  $region28: #{lenet_forward.5} parent=0 // pred_region
    _
  $region29: #{lenet_forward.5} parent=0 // pred_fallthru
    _
  // Predicated region
  $region30: #{lenet_forward.5} parent=0 // pred_check
    _
  $region31: #{lenet_forward.5} parent=0 // pred_check_branch
    %31 = sbr.rel (0) target = $region33
  $region32: #{lenet_forward.5} parent=0 // pred_region
    _
  $region33: #{lenet_forward.5} parent=0 // pred_fallthru
    _
  // Predicated region
  $region34: #{lenet_forward.5} parent=0 // pred_check
    _
  $region35: #{lenet_forward.5} parent=0 // pred_check_branch
    %33 = sbr.rel (0) target = $region37
  $region36: #{lenet_forward.5} parent=0 // pred_region
    _
  $region37: #{lenet_forward.5} parent=0 // pred_fallthru
    _
  %v35 = vld [vmem:[%s0] sm:$0xff]
  %v36 = vld [vmem:[%s0 + $0x8] sm:$0xff]
  %v37 = vld [vmem:[%s1] sm:$0xf]
  %v38 = vld [vmem:[%s1 + $0x4] sm:$0xf]
  %v39 = vld [vmem:[%s1 + $0x8] sm:$0xf]
  %v40 = vld [vmem:[%s1 + $0xc] sm:$0xf]
  %v41 = vld [vmem:[%s1 + $0x10] sm:$0xf]
  %v42 = vld [vmem:[%s1 + $0x14] sm:$0xf]
  %v43 = vld [vmem:[%s1 + $0x18] sm:$0xf]
  %v44 = vld [vmem:[%s1 + $0x1c] sm:$0xf]
  %v45 = vld [vmem:[%s1 + $0x20] sm:$0xf]
  %v46 = vld [vmem:[%s1 + $0x24] sm:$0xf]
  %v47 = vld [vmem:[%s1 + $0x28] sm:$0xf]
  %v48 = vld [vmem:[%s1 + $0x2c] sm:$0xf]
  %v49 = vld [vmem:[%s1 + $0x30] sm:$0xf]
  %v50 = vld [vmem:[%s1 + $0x34] sm:$0xf]
  %v51 = vld [vmem:[%s1 + $0x38] sm:$0xf]
  %v52 = vld [vmem:[%s1 + $0x3c] sm:$0xf]
  %v53 = vld [vmem:[%s1 + $0x40] sm:$0xf]
  %v54 = vld [vmem:[%s1 + $0x44] sm:$0xf]
  %v55 = vld [vmem:[%s1 + $0x48] sm:$0xf]
  %v56 = vld [vmem:[%s1 + $0x4c] sm:$0xf]
  %v57 = vld [vmem:[%s1 + $0x50] sm:$0xf]
  %v58 = vld [vmem:[%s1 + $0x54] sm:$0xf]
  %v59 = vld [vmem:[%s1 + $0x58] sm:$0xf]
  %v60 = vld [vmem:[%s1 + $0x5c] sm:$0xf]
  %v61 = vld [vmem:[%s1 + $0x60] sm:$0xf]
  %v62 = vld [vmem:[%s1 + $0x64] sm:$0xf]
  %v63 = vld [vmem:[%s1 + $0x68] sm:$0xf]
  %v64 = vld [vmem:[%s1 + $0x6c] sm:$0xf]
  %v65 = vld [vmem:[%s1 + $0x70] sm:$0xf]
  %v66 = vld [vmem:[%s1 + $0x74] sm:$0xf]
  %v67 = vld [vmem:[%s1 + $0x78] sm:$0xf]
  %v68 = vld [vmem:[%s1 + $0x7c] sm:$0xf]
  %v69 = vld [vmem:[%s1 + $0x80] sm:$0xf]
  %v70 = vld [vmem:[%s1 + $0x84] sm:$0xf]
  %v71 = vld [vmem:[%s1 + $0x88] sm:$0xf]
  %v72 = vld [vmem:[%s1 + $0x8c] sm:$0xf]
  %v73 = vld [vmem:[%s1 + $0x90] sm:$0xf]
  %v74 = vld [vmem:[%s1 + $0x94] sm:$0xf]
  %v75 = vld [vmem:[%s1 + $0x98] sm:$0xf]
  %v76 = vld [vmem:[%s1 + $0x9c] sm:$0xf]
  %v77 = vld [vmem:[%s1 + $0xa0] sm:$0xf]
  %v78 = vld [vmem:[%s1 + $0xa4] sm:$0xf]
  %v79 = vld [vmem:[%s1 + $0xa8] sm:$0xf]
  %v80 = vld [vmem:[%s1 + $0xac] sm:$0xf]
  %v81 = vld [vmem:[%s1 + $0xb0] sm:$0xf]
  %v82 = vld [vmem:[%s1 + $0xb4] sm:$0xf]
  %v83 = vld [vmem:[%s1 + $0xb8] sm:$0xf]
  %v84 = vld [vmem:[%s1 + $0xbc] sm:$0xf]
  %v85 = vld [vmem:[%s1 + $0xc0] sm:$0xf]
  %v86 = vld [vmem:[%s1 + $0xc4] sm:$0xf]
  %v87 = vld [vmem:[%s2] sm:$0x1]
  %v89 = vperm.slane %v87, 0
  %v93 = vunpack.c.l.b16 %v35
  %v94 = vunpack.c.h.b16 %v35
  %v95 = vunpack.c.l.b16 %v36
  %v96 = vunpack.c.h.b16 %v36
  %v97 = vpack.c.b16 %v93, %v93
  %v98 = vpack.c.b16 %v94, %v94
  %v99 = vpack.c.b16 %v95, %v95
  %v100 = vpack.c.b16 %v96, %v96
  %v154 = vunpack.c.l.b16 %v37
  %v155 = vunpack.c.l.b16 %v38
  %v156 = vunpack.c.l.b16 %v39
  %v157 = vunpack.c.l.b16 %v40
  %v158 = vunpack.c.l.b16 %v41
  %v159 = vunpack.c.l.b16 %v42
  %v160 = vunpack.c.l.b16 %v43
  %v161 = vunpack.c.l.b16 %v44
  %v162 = vunpack.c.l.b16 %v45
  %v163 = vunpack.c.l.b16 %v46
  %v164 = vunpack.c.l.b16 %v47
  %v165 = vunpack.c.l.b16 %v48
  %v166 = vunpack.c.l.b16 %v49
  %v167 = vunpack.c.l.b16 %v50
  %v168 = vunpack.c.l.b16 %v51
  %v169 = vunpack.c.l.b16 %v52
  %v170 = vunpack.c.l.b16 %v53
  %v171 = vunpack.c.l.b16 %v54
  %v172 = vunpack.c.l.b16 %v55
  %v173 = vunpack.c.l.b16 %v56
  %v174 = vunpack.c.l.b16 %v57
  %v175 = vunpack.c.l.b16 %v58
  %v176 = vunpack.c.l.b16 %v59
  %v177 = vunpack.c.l.b16 %v60
  %v178 = vunpack.c.l.b16 %v61
  %v179 = vunpack.c.l.b16 %v62
  %v180 = vunpack.c.l.b16 %v63
  %v181 = vunpack.c.l.b16 %v64
  %v182 = vunpack.c.l.b16 %v65
  %v183 = vunpack.c.l.b16 %v66
  %v184 = vunpack.c.l.b16 %v67
  %v185 = vunpack.c.l.b16 %v68
  %v186 = vunpack.c.l.b16 %v69
  %v187 = vunpack.c.l.b16 %v70
  %v188 = vunpack.c.l.b16 %v71
  %v189 = vunpack.c.l.b16 %v72
  %v190 = vunpack.c.l.b16 %v73
  %v191 = vunpack.c.l.b16 %v74
  %v192 = vunpack.c.l.b16 %v75
  %v193 = vunpack.c.l.b16 %v76
  %v194 = vunpack.c.l.b16 %v77
  %v195 = vunpack.c.l.b16 %v78
  %v196 = vunpack.c.l.b16 %v79
  %v197 = vunpack.c.l.b16 %v80
  %v198 = vunpack.c.l.b16 %v81
  %v199 = vunpack.c.l.b16 %v82
  %v200 = vunpack.c.l.b16 %v83
  %v201 = vunpack.c.l.b16 %v84
  %v202 = vunpack.c.l.b16 %v85
  %v203 = vunpack.c.l.b16 %v86
  %v204 = vpack.c.b16 %v155, %v154
  %v205 = vpack.c.b16 %v157, %v156
  %v206 = vpack.c.b16 %v159, %v158
  %v207 = vpack.c.b16 %v161, %v160
  %v208 = vpack.c.b16 %v163, %v162
  %v209 = vpack.c.b16 %v165, %v164
  %v210 = vpack.c.b16 %v167, %v166
  %v211 = vpack.c.b16 %v169, %v168
  %v212 = vpack.c.b16 %v171, %v170
  %v213 = vpack.c.b16 %v173, %v172
  %v214 = vpack.c.b16 %v175, %v174
  %v215 = vpack.c.b16 %v177, %v176
  %v216 = vpack.c.b16 %v179, %v178
  %v217 = vpack.c.b16 %v181, %v180
  %v218 = vpack.c.b16 %v183, %v182
  %v219 = vpack.c.b16 %v185, %v184
  %v220 = vpack.c.b16 %v187, %v186
  %v221 = vpack.c.b16 %v189, %v188
  %v222 = vpack.c.b16 %v191, %v190
  %v223 = vpack.c.b16 %v193, %v192
  %v224 = vpack.c.b16 %v195, %v194
  %v225 = vpack.c.b16 %v197, %v196
  %v226 = vpack.c.b16 %v199, %v198
  %v227 = vpack.c.b16 %v201, %v200
  %v228 = vpack.c.b16 %v203, %v202
  %vm254 = vcmask 130048
  %v256 = vsel %vm254, %v100, 0
  %258 = vmatpush.bf16.msra.mxu0 %v211
  %259 = vmatpush.bf16.msra.mxu0 %v210
  %260 = vmatpush.bf16.msra.mxu0 %v209
  %261 = vmatpush.bf16.msra.mxu0 %v208
  %262 = vmatpush.bf16.msra.mxu0 %v207
  %263 = vmatpush.bf16.msra.mxu0 %v206
  %264 = vmatpush.bf16.msra.mxu0 %v205
  %265 = vmatpush.bf16.msra.mxu0 %v204
  %266 = vmatmul.bf16.gmra.mxu0 %v97
  %v267 = vpop.f32.mrf.mxu0
  %v268 = vadd.f32 %v89, %v267
  %v269 = vpop.f32.mrf.mxu0
  %270 = vdwg.mxu0
  %271 = vmatpush.bf16.msra.mxu0 %v219
  %272 = vmatpush.bf16.msra.mxu0 %v218
  %273 = vmatpush.bf16.msra.mxu0 %v217
  %274 = vmatpush.bf16.msra.mxu0 %v216
  %275 = vmatpush.bf16.msra.mxu0 %v215
  %276 = vmatpush.bf16.msra.mxu0 %v214
  %277 = vmatpush.bf16.msra.mxu0 %v213
  %278 = vmatpush.bf16.msra.mxu0 %v212
  %279 = vmatmul.bf16.gmra.mxu0 %v98
  %v280 = vpop.f32.mrf.mxu0
  %v281 = vadd.f32 %v268, %v280
  %v282 = vpop.f32.mrf.mxu0
  %283 = vdwg.mxu0
  %284 = vmatpush.bf16.msra.mxu0 %v227
  %285 = vmatpush.bf16.msra.mxu0 %v226
  %286 = vmatpush.bf16.msra.mxu0 %v225
  %287 = vmatpush.bf16.msra.mxu0 %v224
  %288 = vmatpush.bf16.msra.mxu0 %v223
  %289 = vmatpush.bf16.msra.mxu0 %v222
  %290 = vmatpush.bf16.msra.mxu0 %v221
  %291 = vmatpush.bf16.msra.mxu0 %v220
  %292 = vmatmul.bf16.gmra.mxu0 %v99
  %v293 = vpop.f32.mrf.mxu0
  %v294 = vadd.f32 %v281, %v293
  %v295 = vpop.f32.mrf.mxu0
  %296 = vdwg.mxu0
  %297 = vmatpush.bf16.msra.mxu0 0
  %298 = vmatpush.bf16.msra.mxu0 0
  %299 = vmatpush.bf16.msra.mxu0 0
  %300 = vmatpush.bf16.msra.mxu0 0
  %301 = vmatpush.bf16.msra.mxu0 0
  %302 = vmatpush.bf16.msra.mxu0 0
  %303 = vmatpush.bf16.msra.mxu0 0
  %304 = vmatpush.bf16.msra.mxu0 %v228
  %305 = vmatmul.bf16.gmra.mxu0 %v256
  %v306 = vpop.f32.mrf.mxu0
  %v307 = vadd.f32 %v294, %v306
  %v308 = vpop.f32.mrf.mxu0
  %309 = vdwg.mxu0
  %vm310 = vcmp.gt.f32.partialorder %v307, 0.0
  %v311 = vmul.f32 %v307, 0.2
  %v312 = vsel %vm310, %v307, %v311
  %v313 = vpack.c.bf16 %v312, %v312
  %v314 = vld [vmem:[%s3] sm:$0xf]
  %v315 = vld [vmem:[%s3 + $0x4] sm:$0xf]
  %v316 = vld [vmem:[%s3 + $0x8] sm:$0xf]
  %v317 = vld [vmem:[%s3 + $0xc] sm:$0xf]
  %v318 = vld [vmem:[%s3 + $0x10] sm:$0xf]
  %v319 = vld [vmem:[%s3 + $0x14] sm:$0xf]
  %v320 = vld [vmem:[%s3 + $0x18] sm:$0xf]
  %v321 = vld [vmem:[%s3 + $0x1c] sm:$0xf]
  %v322 = vld [vmem:[%s3 + $0x20] sm:$0xf]
  %v323 = vld [vmem:[%s3 + $0x24] sm:$0xf]
  %v324 = vld [vmem:[%s3 + $0x28] sm:$0xf]
  %v325 = vld [vmem:[%s3 + $0x2c] sm:$0xf]
  %v326 = vld [vmem:[%s3 + $0x30] sm:$0xf]
  %v327 = vld [vmem:[%s3 + $0x34] sm:$0xf]
  %v328 = vld [vmem:[%s3 + $0x38] sm:$0xf]
  %v329 = vld [vmem:[%s4] sm:$0x1]
  %v331 = vperm.slane %v329, 0
  %v348 = vunpack.c.l.b16 %v314
  %v349 = vunpack.c.l.b16 %v315
  %v350 = vunpack.c.l.b16 %v316
  %v351 = vunpack.c.l.b16 %v317
  %v352 = vunpack.c.l.b16 %v318
  %v353 = vunpack.c.l.b16 %v319
  %v354 = vunpack.c.l.b16 %v320
  %v355 = vunpack.c.l.b16 %v321
  %v356 = vunpack.c.l.b16 %v322
  %v357 = vunpack.c.l.b16 %v323
  %v358 = vunpack.c.l.b16 %v324
  %v359 = vunpack.c.l.b16 %v325
  %v360 = vunpack.c.l.b16 %v326
  %v361 = vunpack.c.l.b16 %v327
  %v362 = vunpack.c.l.b16 %v328
  %v363 = vpack.c.b16 %v349, %v348
  %v364 = vpack.c.b16 %v351, %v350
  %v365 = vpack.c.b16 %v353, %v352
  %v366 = vpack.c.b16 %v355, %v354
  %v367 = vpack.c.b16 %v357, %v356
  %v368 = vpack.c.b16 %v359, %v358
  %v369 = vpack.c.b16 %v361, %v360
  %v370 = vpack.c.b16 %v362, %v362
  %vm378 = vcmask 982016
  %v380 = vsel %vm378, %v313, 0
  %vm382 = vcmask 1043456
  %v384 = vsel %vm382, %v370, 0
  %386 = vmatpush.bf16.msra.mxu0 %v384
  %387 = vmatpush.bf16.msra.mxu0 %v369
  %388 = vmatpush.bf16.msra.mxu0 %v368
  %389 = vmatpush.bf16.msra.mxu0 %v367
  %390 = vmatpush.bf16.msra.mxu0 %v366
  %391 = vmatpush.bf16.msra.mxu0 %v365
  %392 = vmatpush.bf16.msra.mxu0 %v364
  %393 = vmatpush.bf16.msra.mxu0 %v363
  %394 = vmatmul.bf16.gmra.mxu0 %v380
  %v395 = vpop.f32.mrf.mxu0
  %v396 = vadd.f32 %v331, %v395
  %v397 = vpop.f32.mrf.mxu0
  %398 = vdwg.mxu0
  %vm399 = vcmp.gt.f32.partialorder %v396, 0.0
  %v400 = vmul.f32 %v396, 0.2
  %v401 = vsel %vm399, %v396, %v400
  %v402 = vpack.c.bf16 %v401, %v401
  %v403 = vld [vmem:[%s5] sm:$0xf]
  %v404 = vld [vmem:[%s5 + $0x4] sm:$0xf]
  %v405 = vld [vmem:[%s5 + $0x8] sm:$0xf]
  %v406 = vld [vmem:[%s5 + $0xc] sm:$0xf]
  %v407 = vld [vmem:[%s5 + $0x10] sm:$0xf]
  %v408 = vld [vmem:[%s5 + $0x14] sm:$0xf]
  %v409 = vld [vmem:[%s5 + $0x18] sm:$0xf]
  %v410 = vld [vmem:[%s5 + $0x1c] sm:$0xf]
  %v411 = vld [vmem:[%s5 + $0x20] sm:$0xf]
  %v412 = vld [vmem:[%s5 + $0x24] sm:$0xf]
  %v413 = vld [vmem:[%s5 + $0x28] sm:$0x3]
  %v414 = vld [vmem:[%s6] sm:$0x1]
  %v416 = vperm.slane %v414, 0
  %v429 = vunpack.c.l.b16 %v403
  %v430 = vunpack.c.l.b16 %v404
  %v431 = vunpack.c.l.b16 %v405
  %v432 = vunpack.c.l.b16 %v406
  %v433 = vunpack.c.l.b16 %v407
  %v434 = vunpack.c.l.b16 %v408
  %v435 = vunpack.c.l.b16 %v409
  %v436 = vunpack.c.l.b16 %v410
  %v437 = vunpack.c.l.b16 %v411
  %v438 = vunpack.c.l.b16 %v412
  %v439 = vunpack.c.l.b16 %v413
  %v440 = vpack.c.b16 %v430, %v429
  %v441 = vpack.c.b16 %v432, %v431
  %v442 = vpack.c.b16 %v434, %v433
  %v443 = vpack.c.b16 %v436, %v435
  %v444 = vpack.c.b16 %v438, %v437
  %v445 = vpack.c.b16 %v439, %v439
  %vm451 = vcmask 687104
  %v453 = vsel %vm451, %v402, 0
  %vm455 = vcmask 1041408
  %v457 = vsel %vm455, %v445, 0
  %459 = vmatpush.bf16.msra.mxu0 0
  %460 = vmatpush.bf16.msra.mxu0 0
  %461 = vmatpush.bf16.msra.mxu0 %v457
  %462 = vmatpush.bf16.msra.mxu0 %v444
  %463 = vmatpush.bf16.msra.mxu0 %v443
  %464 = vmatpush.bf16.msra.mxu0 %v442
  %465 = vmatpush.bf16.msra.mxu0 %v441
  %466 = vmatpush.bf16.msra.mxu0 %v440
  %467 = vmatmul.bf16.gmra.mxu0 %v453
  %v468 = vpop.f32.mrf.mxu0
  %v469 = vadd.f32 %v416, %v468
  %v470 = vpop.f32.mrf.mxu0
  %471 = vdwg.mxu0
  %vm472 = vcmp.gt.f32.partialorder %v469, 0.0
  %v473 = vmul.f32 %v469, 0.2
  %v474 = vsel %vm472, %v469, %v473
  %v475 = vpack.c.bf16 %v474, %v474
  %v476 = vld [vmem:[%s7] sm:$0xf]
  %v477 = vld [vmem:[%s7 + $0x4] sm:$0xf]
  %v478 = vld [vmem:[%s7 + $0x8] sm:$0x3]
  %v479 = vld [vmem:[#allocation2] sm:$0x1]
  %v481 = vperm.slane %v479, 0
  %v486 = vunpack.c.l.b16 %v476
  %v487 = vunpack.c.l.b16 %v477
  %v488 = vunpack.c.l.b16 %v478
  %v489 = vpack.c.b16 %v487, %v486
  %v490 = vpack.c.b16 %v488, %v488
  %vm492 = vcmask 162816
  %v494 = vsel %vm492, %v475, 0
  %v497 = vsel %vm455, %v490, 0
  %499 = vmatpush.bf16.msra.mxu0 0
  %500 = vmatpush.bf16.msra.mxu0 0
  %501 = vmatpush.bf16.msra.mxu0 0
  %502 = vmatpush.bf16.msra.mxu0 0
  %503 = vmatpush.bf16.msra.mxu0 0
  %504 = vmatpush.bf16.msra.mxu0 0
  %505 = vmatpush.bf16.msra.mxu0 %v497
  %506 = vmatpush.bf16.msra.mxu0 %v489
  %507 = vmatmul.bf16.gmra.mxu0 %v494
  %v508 = vpop.f32.mrf.mxu0
  %v509 = vadd.f32 %v481, %v508
  %v510 = vpop.f32.mrf.mxu0
  %511 = vdwg.mxu0
  %v512 = vxor.u32 %v509, 2147483648
  %v513 = vmul.f32 %v512, 1.442695
  %v514 = vpow.pop %v513
  %v515 = vadd.f32 %v514, 1.0
  %v516 = vrcp.pop %v515
  %v517 = vmul.f32 %v515, %v516
  %v518 = vsub.f32 1.0, %v517
  %v519 = vmul.f32 %v516, %v518
  %v520 = vadd.f32 %v516, %v519
  %vm521 = vweird.f32 %v515
  %vm522 = vweird.f32 %v516
  %vm523 = vmor %vm521, %vm522
  %v524 = vsel %vm523, %v516, %v520
  %v525 = vand.u32 2147483647, %v515
  %vm526 = vcmp.eq.f32.partialorder %v525, 8.507059e+37
  %v527 = vand.u32 %v515, 2147483648
  %v528 = vor.u32 1.1754944e-38, %v527
  %v529 = vsel %vm526, %v528, %v524
  %v530 = vmul.f32 1.0, %v529
  %vm531 = vcmask 7168
  %532 = vst.msk [vmem:[%s9] sm:$0xff] %vm531, %v530
  // Predicated region
  $region38: #{lenet_forward.5} parent=0 // pred_check
    _
  $region39: #{lenet_forward.5} parent=0 // pred_check_branch
    %534 = sbr.rel (0) target = $region41
  $region40: #{lenet_forward.5} parent=0 // pred_region
    _
  $region41: #{lenet_forward.5} parent=0 // pred_fallthru
    _
  // Predicated region
  $region42: #{lenet_forward.5} parent=0 // pred_check
    _
  $region43: #{lenet_forward.5} parent=0 // pred_check_branch
    %536 = sbr.rel (0) target = $region45
  $region44: #{lenet_forward.5} parent=0 // pred_region
    _
  $region45: #{lenet_forward.5} parent=0 // pred_fallthru
    _

</llo_original>
